<compile_context>
chip_gen: v5e
topology: v5e:2x2
jax: 0.10.0
libtpu: 0.0.40
codegen_flags: <defaults>
</compile_context>

<pallas_src>
import functools
import math

import numpy as np
import jax
import jax.numpy as jnp
from jax.experimental import pallas as pl
from jax.experimental.pallas import tpu as pltpu

_VMEM_LIMIT = 48 * 1024 * 1024   # raise scoped VMEM so larger double-buffered tiles fit
_CONV_TILE_HW = 2048             # pixel-tile budget per conv grid step
_WARP_TILE_HW = 2048             # pixel-tile budget per warp grid step


def _pick_tile(hw, budget):
    """Largest pixel tile <= budget that is a multiple of 128 and divides hw (else full hw)."""
    if hw <= budget:
        return hw
    t = budget - (budget % 128)
    while t >= 128:
        if hw % t == 0:
            return t
        t -= 128
    return hw   # fall back to the full extent (no tiling)


# ---------------------------------------------------------------------------
# Pallas kernels
# ---------------------------------------------------------------------------

def _conv_fused_kernel(p_ref, w_ref, b_ref, o_ref, *, relu):
    """Fused-taps conv matmul, channels-first, lane-dense HW-last layout.

    p_ref: (1, taps*Cin, T)   -- im2col patches for one batch element / pixel tile
    w_ref: (Cout, taps*Cin)   -- fused conv weights
    b_ref: (Cout, 1)          -- bias (f32)
    o_ref: (1, Cout, T)       -- output tile, HW lane-dense
    """
    acc = jnp.dot(w_ref[...], p_ref[0], preferred_element_type=jnp.float32)  # (Cout, T)
    acc = acc + b_ref[...]
    if relu:
        acc = jnp.maximum(acc, 0.0)
    o_ref[0] = acc.astype(o_ref.dtype)


def _bspline_coords_kernel(p_ref, bh_ref, bwt_ref, o_ref, *, ndim):
    """Separable B-spline upsampling of all control-point channels + identity grid.

    p_ref : (M, gh, gw) control-point displacements, channel c -> (batch c//ndim, axis c%ndim)
    bh_ref: (H, gh); bwt_ref: (gw, W); o_ref: (M, H, W) absolute sample coordinates (pixels).
    Axis 0 = y (rows), axis 1 = x (cols).
    """
    bh = bh_ref[...]
    bwt = bwt_ref[...]
    h, w = o_ref.shape[1], o_ref.shape[2]
    iy = jax.lax.broadcasted_iota(jnp.int32, (h, w), 0).astype(jnp.float32)
    ix = jax.lax.broadcasted_iota(jnp.int32, (h, w), 1).astype(jnp.float32)
    for c in range(p_ref.shape[0]):    # static unroll, M = N*ndim (tiny)
        t = jnp.dot(bh, p_ref[c], preferred_element_type=jnp.float32)        # (H, gw)
        dvf = jnp.dot(t, bwt, preferred_element_type=jnp.float32)            # (H, W)
        o_ref[c] = dvf + (iy if (c % ndim) == 0 else ix)


def _warp_kernel(c_ref, imgT_ref, o_ref, *, h, w):
    """Bilinear grid-sample (zero padding) via separable hat weights on the MXU.

    c_ref   : (1, 2, T)   absolute sample coords (row 0 = y, row 1 = x) for T output pixels
    imgT_ref: (1, W, H)   transposed moving image
    o_ref   : (1, 1, T)   warped pixels (lane-dense row)

    out[p] = sum_{iy,ix} hat(iy - y_p) * hat(ix - x_p) * I[iy, ix]
    Out-of-image taps get zero weight, matching grid_sample padding_mode='zeros'.
    Memory is O(T*(H+W)); no (HW, HW) temporaries.
    """
    sy = c_ref[0, 0:1, :]                                                    # (1, T)
    sx = c_ref[0, 1:2, :]                                                    # (1, T)
    iy = jax.lax.broadcasted_iota(jnp.int32, (h, 1), 0).astype(jnp.float32)  # (H, 1)
    ix = jax.lax.broadcasted_iota(jnp.int32, (w, 1), 0).astype(jnp.float32)  # (W, 1)
    wy = jnp.maximum(1.0 - jnp.abs(iy - sy), 0.0)                            # (H, T)
    wx = jnp.maximum(1.0 - jnp.abs(ix - sx), 0.0)                            # (W, T)
    t = jnp.dot(imgT_ref[0], wy, preferred_element_type=jnp.float32)         # (W, T)
    o_ref[0] = jnp.sum(wx * t, axis=0, keepdims=True)                        # (1, T)


# ---------------------------------------------------------------------------
# Pallas wrappers
# ---------------------------------------------------------------------------

def _im2col_cf(x, k):
    """Channels-first im2col glue: (N, C, H, W) -> (N, K*K*C, H*W), 'same' padding."""
    # TODO(synk): move the halo shifts in-kernel (padded block + static slices) to avoid the
    # K*K im2col materialization in HBM for large images.
    n, c, h, w = x.shape
    p = k // 2
    xp = jnp.pad(x, ((0, 0), (0, 0), (p, p), (p, p)))
    cols = [xp[:, :, dy:dy + h, dx:dx + w].reshape(n, c, h * w)
            for dy in range(k) for dx in range(k)]
    return jnp.concatenate(cols, axis=1)


def conv2d_nchw(x, w, b, *, relu, compute_dtype=jnp.bfloat16, out_dtype=jnp.float32,
                tile_hw=_CONV_TILE_HW):
    """'Same' conv, stride 1. x: (N, Cin, H, W); w: (Cout, Cin, K, K) (PyTorch layout)."""
    n, cin, h, wd = x.shape
    cout, _, k, _ = w.shape
    hw = h * wd
    if k == 1:
        patches = x.reshape(n, cin, hw)
        kdim = cin
    else:
        patches = _im2col_cf(x, k)
        kdim = k * k * cin
    wf = jnp.transpose(w, (0, 2, 3, 1)).reshape(cout, kdim)   # matches (dy, dx, c) ordering
    patches = patches.astype(compute_dtype)                   # bf16 MXU operands, f32 accum
    wf = wf.astype(compute_dtype)
    bcol = b.reshape(cout, 1).astype(jnp.float32)

    t = _pick_tile(hw, tile_hw)
    grid = (n, hw // t)
    out = pl.pallas_call(
        functools.partial(_conv_fused_kernel, relu=relu),
        out_shape=jax.ShapeDtypeStruct((n, cout, hw), out_dtype),
        grid=grid,
        in_specs=[
            pl.BlockSpec((1, kdim, t), lambda i, j: (i, 0, j)),
            pl.BlockSpec((cout, kdim), lambda i, j: (0, 0)),
            pl.BlockSpec((cout, 1), lambda i, j: (0, 0)),
        ],
        out_specs=pl.BlockSpec((1, cout, t), lambda i, j: (i, 0, j)),
        compiler_params=pltpu.CompilerParams(
            dimension_semantics=("parallel", "parallel"),
            vmem_limit_bytes=_VMEM_LIMIT),
    )(patches, wf, bcol)
    return out.reshape(n, cout, h, wd)


def bspline_coords(p, bh, bwt, *, ndim):
    """p: (M, gh, gw) control-point channels; bh: (H, gh); bwt: (gw, W) -> (M, H, W) coords."""
    m, gh, gw = p.shape
    h, w = bh.shape[0], bwt.shape[1]
    return pl.pallas_call(
        functools.partial(_bspline_coords_kernel, ndim=ndim),
        out_shape=jax.ShapeDtypeStruct((m, h, w), jnp.float32),
        grid=(1,),   # single grid step: all channels batched in one kernel invocation
        in_specs=[
            pl.BlockSpec((m, gh, gw), lambda i: (0, 0, 0)),
            pl.BlockSpec((h, gh), lambda i: (0, 0)),
            pl.BlockSpec((gw, w), lambda i: (0, 0)),
        ],
        out_specs=pl.BlockSpec((m, h, w), lambda i: (0, 0, 0)),
        compiler_params=pltpu.CompilerParams(
            dimension_semantics=("parallel",),
            vmem_limit_bytes=_VMEM_LIMIT),
    )(p, bh, bwt)


def warp_bilinear(coords, img_t, *, tile_hw=_WARP_TILE_HW):
    """coords: (N, 2, HW) absolute (y, x) sample coords; img_t: (N, W, H) -> (N, 1, HW)."""
    n, _, hw = coords.shape
    wd, h = img_t.shape[1], img_t.shape[2]
    t = _pick_tile(hw, tile_hw)
    kern = functools.partial(_warp_kernel, h=h, w=wd)
    return pl.pallas_call(
        kern,
        out_shape=jax.ShapeDtypeStruct((n, 1, hw), jnp.float32),
        grid=(n, hw // t),
        in_specs=[
            pl.BlockSpec((1, 2, t), lambda i, j: (i, 0, j)),
            pl.BlockSpec((1, wd, h), lambda i, j: (i, 0, 0)),
        ],
        out_specs=pl.BlockSpec((1, 1, t), lambda i, j: (i, 0, j)),
        compiler_params=pltpu.CompilerParams(
            dimension_semantics=("parallel", "parallel"),
            vmem_limit_bytes=_VMEM_LIMIT),
    )(coords, img_t)


# ---------------------------------------------------------------------------
# LitDIRNet forward (glue around the kernels)
# ---------------------------------------------------------------------------

def dirnet_forward(params, fixed, moving, *, grid_spacing, num_conv_layers,
                   num_dense_layers, compute_dtype):
    """fixed, moving: (N, 1, H, W) NCHW -> B-spline params (N, ndim, gh, gw) NCHW."""
    x = jnp.concatenate([fixed, moving], axis=1)            # (N, 2, H, W)
    n_pool = int(round(math.log2(grid_spacing)))
    assert 2 ** n_pool == grid_spacing, "grid_spacing must be a power of 2"
    for i in range(num_conv_layers):
        x = conv2d_nchw(x, params[f"conv{i}_w"], params[f"conv{i}_b"],
                        relu=True, compute_dtype=compute_dtype,
                        out_dtype=compute_dtype)             # bf16 activations between layers
        if i < n_pool:
            # TODO(synk): AvgPool2d(2) kept as tiny plain-JAX glue; could be fused into the
            # conv epilogue to save one HBM round trip per pooled layer.
            n, c, h, w = x.shape
            x = x.astype(jnp.float32).reshape(n, c, h // 2, 2, w // 2, 2).mean(axis=(3, 5))
            x = x.astype(compute_dtype)
    for j in range(num_dense_layers):
        last = j == num_dense_layers - 1
        x = conv2d_nchw(x, params[f"dense{j}_w"], params[f"dense{j}_b"],
                        relu=not last, compute_dtype=compute_dtype,
                        out_dtype=jnp.float32 if last else compute_dtype)
    return x                                                 # (N, ndim, gh, gw) f32


def _bspline_matrix(out_size, grid_size, factor):
    """Cubic B-spline interpolation matrix (out_size, grid_size), rows normalized."""
    u = np.arange(out_size, dtype=np.float64) / float(factor)
    i = np.arange(grid_size, dtype=np.float64)
    t = np.abs(u[:, None] - i[None, :])
    b = np.where(t < 1.0, (4.0 - 6.0 * t ** 2 + 3.0 * t ** 3) / 6.0,
                 np.where(t < 2.0, ((2.0 - t) ** 3) / 6.0, 0.0))
    b = b / b.sum(axis=1, keepdims=True)
    return jnp.asarray(b, dtype=jnp.float32)


def bspline_transform(bsp_params, fixed, moving, upsampling_factors):
    """bsp_params: (N, 2, gh, gw); moving: (N, 1, H, W) -> warped (N, 1, H, W)."""
    del fixed  # only defines the target grid shape, which equals moving's here
    n, nd, gh, gw = bsp_params.shape
    fy, fx = upsampling_factors
    h, w = gh * fy, gw * fx
    bh = _bspline_matrix(h, gh, fy)                          # (H, gh)
    bwt = _bspline_matrix(w, gw, fx).T                       # (gw, W)
    # Dense absolute sample coordinates straight out of the Pallas kernel (identity grid fused).
    coords = bspline_coords(bsp_params.reshape(n * nd, gh, gw), bh, bwt, ndim=nd)
    coords = coords.reshape(n, nd, h * w)                    # (y, x) coords, HW last
    img_t = jnp.transpose(moving[:, 0], (0, 2, 1))           # (N, W, H)
    warped = warp_bilinear(coords, img_t)                    # (N, 1, HW)
    return warped.reshape(n, 1, h, w)


def lit_dirnet_forward(params, fixed, moving, *, grid_spacing, upsampling_factors,
                       num_conv_layers=5, num_dense_layers=2,
                       compute_dtype=jnp.bfloat16):
    bsp_params = dirnet_forward(params, fixed, moving, grid_spacing=grid_spacing,
                                num_conv_layers=num_conv_layers,
                                num_dense_layers=num_dense_layers,
                                compute_dtype=compute_dtype)
    return bspline_transform(bsp_params, fixed, moving, upsampling_factors)


# ---------------------------------------------------------------------------
# Deterministic parameter init (synthetic; mirrors the module's constructor shapes)
# PyTorch Conv2d weight layout: (Cout, Cin, K, K).
# ---------------------------------------------------------------------------

def init_params(key, *, kernels=32, kernel_size=3, num_conv_layers=5,
                num_dense_layers=2, ndim=2):
    params = {}
    cin = 2  # fixed + moving concatenated
    for i in range(num_conv_layers):
        key, kw, kb = jax.random.split(key, 3)
        fan_in = cin * kernel_size * kernel_size
        params[f"conv{i}_w"] = (jax.random.normal(
            kw, (kernels, cin, kernel_size, kernel_size), jnp.float32)
            * np.sqrt(2.0 / fan_in))
        params[f"conv{i}_b"] = jax.random.normal(kb, (kernels,), jnp.float32) * 0.01
        cin = kernels
    for j in range(num_dense_layers):
        key, kw = jax.random.split(key)
        last = j == num_dense_layers - 1
        cout = ndim if last else kernels
        scale = 0.05 if last else np.sqrt(2.0 / cin)  # small final scale -> modest DVF
        params[f"dense{j}_w"] = jax.random.normal(kw, (cout, cin, 1, 1), jnp.float32) * scale
        params[f"dense{j}_b"] = jnp.zeros((cout,), jnp.float32)
        cin = cout
    return params


if __name__ == "__main__":
    key = jax.random.PRNGKey(0)
    kf, km, kp = jax.random.split(key, 3)

    N, H, W = 2, 16, 16
    grid_spacing = 2                 # control-point spacing (pixels)
    upsampling_factors = (2, 2)      # control grid -> image resolution

    fixed = jax.random.uniform(kf, (N, 1, H, W), dtype=jnp.float32)
    moving = jax.random.uniform(km, (N, 1, H, W), dtype=jnp.float32)
    params = init_params(kp, kernels=32, kernel_size=3, num_conv_layers=5,
                         num_dense_layers=2, ndim=2)

    fwd = jax.jit(functools.partial(lit_dirnet_forward,
                                    grid_spacing=grid_spacing,
                                    upsampling_factors=upsampling_factors))
    warped = fwd(params, fixed, moving)
    jax.block_until_ready(warped)
    assert warped.shape == (N, 1, H, W)
    assert bool(jnp.all(jnp.isfinite(warped)))
    print("KERNEL_OK")
</pallas_src>

<mosaic_0001>
module attributes {stable_mosaic.version = 11 : i64} {
  func.func @_conv_fused_kernel(%arg0: i32, %arg1: i32, %arg2: memref<1x18x256xbf16, #tpu.memory_space<vmem>>, %arg3: memref<32x18xbf16, #tpu.memory_space<vmem>>, %arg4: memref<32x1xf32, #tpu.memory_space<vmem>>, %arg5: memref<1x32x256xbf16, #tpu.memory_space<vmem>>) attributes {dimension_semantics = [#tpu.dimension_semantics<parallel>, #tpu.dimension_semantics<parallel>], iteration_bounds = array<i64: 2, 1>, scalar_prefetch = 0 : i64, scratch_operands = 0 : i64, tpu.core_type = #tpu.core_type<tc>, window_params = [{transform_indices = @transform_0, window_bounds = array<i64: 1, 18, 256>}, {pipeline_mode = #tpu.pipeline_mode<synchronous>, transform_indices = @transform_1, window_bounds = array<i64: 32, 18>}, {pipeline_mode = #tpu.pipeline_mode<synchronous>, transform_indices = @transform_2, window_bounds = array<i64: 32, 1>}, {transform_indices = @transform_3, window_bounds = array<i64: 1, 32, 256>}]} {
    %c0 = arith.constant 0 : index
    %c0_0 = arith.constant 0 : index
    %0 = vector.load %arg3[%c0, %c0_0] : memref<32x18xbf16, #tpu.memory_space<vmem>>, vector<32x18xbf16>
    %c0_1 = arith.constant 0 : index
    %c0_2 = arith.constant 0 : index
    %c0_3 = arith.constant 0 : index
    %1 = vector.load %arg2[%c0_1, %c0_2, %c0_3] : memref<1x18x256xbf16, #tpu.memory_space<vmem>>, vector<1x18x256xbf16>
    %2 = vector.shape_cast %1 : vector<1x18x256xbf16> to vector<18x256xbf16>
    %cst = arith.constant dense<0.000000e+00> : vector<32x256xf32>
    %3 = tpu.matmul %0, %2, %cst {dimension_numbers = #tpu.dot_dimension_numbers<[1], [0], [0], [1], [0, 0, 1, 1], [], []>} : vector<32x18xbf16>, vector<18x256xbf16>, vector<32x256xf32> -> vector<32x256xf32>
    %c0_4 = arith.constant 0 : index
    %c0_5 = arith.constant 0 : index
    %4 = vector.load %arg4[%c0_4, %c0_5] : memref<32x1xf32, #tpu.memory_space<vmem>>, vector<32x1xf32>
    %5 = vector.broadcast %4 : vector<32x1xf32> to vector<32x256xf32>
    %6 = arith.addf %3, %5 : vector<32x256xf32>
    %cst_6 = arith.constant 0.000000e+00 : f32
    %7 = vector.broadcast %cst_6 : f32 to vector<32x256xf32>
    %8 = arith.maximumf %6, %7 : vector<32x256xf32>
    %9 = arith.truncf %8 : vector<32x256xf32> to vector<32x256xbf16>
    %c0_7 = arith.constant 0 : index
    %c0_8 = arith.constant 0 : index
    %c0_9 = arith.constant 0 : index
    %10 = vector.load %arg5[%c0_7, %c0_8, %c0_9] : memref<1x32x256xbf16, #tpu.memory_space<vmem>>, vector<1x32x256xbf16>
    %11 = vector.shape_cast %10 : vector<1x32x256xbf16> to vector<32x256xbf16>
    %12 = vector.shape_cast %9 : vector<32x256xbf16> to vector<1x32x256xbf16>
    tpu.vector_store %arg5[%c0_7, %c0_8, %c0_9], %12 {strides = array<i32>} : memref<1x32x256xbf16, #tpu.memory_space<vmem>>, vector<1x32x256xbf16>,
    return
  }
  func.func @transform_0(%arg0: i32, %arg1: i32) -> (i32, i32, i32) {
    %c0_i32 = arith.constant 0 : i32
    %c0_i32_0 = arith.constant 0 : i32
    return %arg0, %c0_i32, %arg1 : i32, i32, i32
  }
  func.func @transform_1(%arg0: i32, %arg1: i32) -> (i32, i32) {
    %c0_i32 = arith.constant 0 : i32
    %c0_i32_0 = arith.constant 0 : i32
    %c0_i32_1 = arith.constant 0 : i32
    return %c0_i32, %c0_i32_0 : i32, i32
  }
  func.func @transform_2(%arg0: i32, %arg1: i32) -> (i32, i32) {
    %c0_i32 = arith.constant 0 : i32
    %c0_i32_0 = arith.constant 0 : i32
    %c0_i32_1 = arith.constant 0 : i32
    return %c0_i32, %c0_i32_0 : i32, i32
  }
  func.func @transform_3(%arg0: i32, %arg1: i32) -> (i32, i32, i32) {
    %c0_i32 = arith.constant 0 : i32
    %c0_i32_0 = arith.constant 0 : i32
    return %arg0, %c0_i32, %arg1 : i32, i32, i32
  }
}

module attributes {stable_mosaic.version = 11 : i64} {
  func.func @_conv_fused_kernel(%arg0: i32, %arg1: i32, %arg2: memref<1x288x64xbf16, #tpu.memory_space<vmem>>, %arg3: memref<32x288xbf16, #tpu.memory_space<vmem>>, %arg4: memref<32x1xf32, #tpu.memory_space<vmem>>, %arg5: memref<1x32x64xbf16, #tpu.memory_space<vmem>>) attributes {dimension_semantics = [#tpu.dimension_semantics<parallel>, #tpu.dimension_semantics<parallel>], iteration_bounds = array<i64: 2, 1>, scalar_prefetch = 0 : i64, scratch_operands = 0 : i64, tpu.core_type = #tpu.core_type<tc>, window_params = [{transform_indices = @transform_0, window_bounds = array<i64: 1, 288, 64>}, {pipeline_mode = #tpu.pipeline_mode<synchronous>, transform_indices = @transform_1, window_bounds = array<i64: 32, 288>}, {pipeline_mode = #tpu.pipeline_mode<synchronous>, transform_indices = @transform_2, window_bounds = array<i64: 32, 1>}, {transform_indices = @transform_3, window_bounds = array<i64: 1, 32, 64>}]} {
    %c0 = arith.constant 0 : index
    %c0_0 = arith.constant 0 : index
    %0 = vector.load %arg3[%c0, %c0_0] : memref<32x288xbf16, #tpu.memory_space<vmem>>, vector<32x288xbf16>
    %c0_1 = arith.constant 0 : index
    %c0_2 = arith.constant 0 : index
    %c0_3 = arith.constant 0 : index
    %1 = vector.load %arg2[%c0_1, %c0_2, %c0_3] : memref<1x288x64xbf16, #tpu.memory_space<vmem>>, vector<1x288x64xbf16>
    %2 = vector.shape_cast %1 : vector<1x288x64xbf16> to vector<288x64xbf16>
    %cst = arith.constant dense<0.000000e+00> : vector<32x64xf32>
    %3 = tpu.matmul %0, %2, %cst {dimension_numbers = #tpu.dot_dimension_numbers<[1], [0], [0], [1], [0, 0, 1, 1], [], []>} : vector<32x288xbf16>, vector<288x64xbf16>, vector<32x64xf32> -> vector<32x64xf32>
    %c0_4 = arith.constant 0 : index
    %c0_5 = arith.constant 0 : index
    %4 = vector.load %arg4[%c0_4, %c0_5] : memref<32x1xf32, #tpu.memory_space<vmem>>, vector<32x1xf32>
    %5 = vector.broadcast %4 : vector<32x1xf32> to vector<32x64xf32>
    %6 = arith.addf %3, %5 : vector<32x64xf32>
    %cst_6 = arith.constant 0.000000e+00 : f32
    %7 = vector.broadcast %cst_6 : f32 to vector<32x64xf32>
    %8 = arith.maximumf %6, %7 : vector<32x64xf32>
    %9 = arith.truncf %8 : vector<32x64xf32> to vector<32x64xbf16>
    %c0_7 = arith.constant 0 : index
    %c0_8 = arith.constant 0 : index
    %c0_9 = arith.constant 0 : index
    %10 = vector.load %arg5[%c0_7, %c0_8, %c0_9] : memref<1x32x64xbf16, #tpu.memory_space<vmem>>, vector<1x32x64xbf16>
    %11 = vector.shape_cast %10 : vector<1x32x64xbf16> to vector<32x64xbf16>
    %12 = vector.shape_cast %9 : vector<32x64xbf16> to vector<1x32x64xbf16>
    tpu.vector_store %arg5[%c0_7, %c0_8, %c0_9], %12 {strides = array<i32>} : memref<1x32x64xbf16, #tpu.memory_space<vmem>>, vector<1x32x64xbf16>,
    return
  }
  func.func @transform_0(%arg0: i32, %arg1: i32) -> (i32, i32, i32) {
    %c0_i32 = arith.constant 0 : i32
    %c0_i32_0 = arith.constant 0 : i32
    return %arg0, %c0_i32, %arg1 : i32, i32, i32
  }
  func.func @transform_1(%arg0: i32, %arg1: i32) -> (i32, i32) {
    %c0_i32 = arith.constant 0 : i32
    %c0_i32_0 = arith.constant 0 : i32
    %c0_i32_1 = arith.constant 0 : i32
    return %c0_i32, %c0_i32_0 : i32, i32
  }
  func.func @transform_2(%arg0: i32, %arg1: i32) -> (i32, i32) {
    %c0_i32 = arith.constant 0 : i32
    %c0_i32_0 = arith.constant 0 : i32
    %c0_i32_1 = arith.constant 0 : i32
    return %c0_i32, %c0_i32_0 : i32, i32
  }
  func.func @transform_3(%arg0: i32, %arg1: i32) -> (i32, i32, i32) {
    %c0_i32 = arith.constant 0 : i32
    %c0_i32_0 = arith.constant 0 : i32
    return %arg0, %c0_i32, %arg1 : i32, i32, i32
  }
}

module attributes {stable_mosaic.version = 11 : i64} {
  func.func @_conv_fused_kernel(%arg0: i32, %arg1: i32, %arg2: memref<1x32x64xbf16, #tpu.memory_space<vmem>>, %arg3: memref<32x32xbf16, #tpu.memory_space<vmem>>, %arg4: memref<32x1xf32, #tpu.memory_space<vmem>>, %arg5: memref<1x32x64xbf16, #tpu.memory_space<vmem>>) attributes {dimension_semantics = [#tpu.dimension_semantics<parallel>, #tpu.dimension_semantics<parallel>], iteration_bounds = array<i64: 2, 1>, scalar_prefetch = 0 : i64, scratch_operands = 0 : i64, tpu.core_type = #tpu.core_type<tc>, window_params = [{transform_indices = @transform_0, window_bounds = array<i64: 1, 32, 64>}, {pipeline_mode = #tpu.pipeline_mode<synchronous>, transform_indices = @transform_1, window_bounds = array<i64: 32, 32>}, {pipeline_mode = #tpu.pipeline_mode<synchronous>, transform_indices = @transform_2, window_bounds = array<i64: 32, 1>}, {transform_indices = @transform_3, window_bounds = array<i64: 1, 32, 64>}]} {
    %c0 = arith.constant 0 : index
    %c0_0 = arith.constant 0 : index
    %0 = vector.load %arg3[%c0, %c0_0] : memref<32x32xbf16, #tpu.memory_space<vmem>>, vector<32x32xbf16>
    %c0_1 = arith.constant 0 : index
    %c0_2 = arith.constant 0 : index
    %c0_3 = arith.constant 0 : index
    %1 = vector.load %arg2[%c0_1, %c0_2, %c0_3] : memref<1x32x64xbf16, #tpu.memory_space<vmem>>, vector<1x32x64xbf16>
    %2 = vector.shape_cast %1 : vector<1x32x64xbf16> to vector<32x64xbf16>
    %cst = arith.constant dense<0.000000e+00> : vector<32x64xf32>
    %3 = tpu.matmul %0, %2, %cst {dimension_numbers = #tpu.dot_dimension_numbers<[1], [0], [0], [1], [0, 0, 1, 1], [], []>} : vector<32x32xbf16>, vector<32x64xbf16>, vector<32x64xf32> -> vector<32x64xf32>
    %c0_4 = arith.constant 0 : index
    %c0_5 = arith.constant 0 : index
    %4 = vector.load %arg4[%c0_4, %c0_5] : memref<32x1xf32, #tpu.memory_space<vmem>>, vector<32x1xf32>
    %5 = vector.broadcast %4 : vector<32x1xf32> to vector<32x64xf32>
    %6 = arith.addf %3, %5 : vector<32x64xf32>
    %cst_6 = arith.constant 0.000000e+00 : f32
    %7 = vector.broadcast %cst_6 : f32 to vector<32x64xf32>
    %8 = arith.maximumf %6, %7 : vector<32x64xf32>
    %9 = arith.truncf %8 : vector<32x64xf32> to vector<32x64xbf16>
    %c0_7 = arith.constant 0 : index
    %c0_8 = arith.constant 0 : index
    %c0_9 = arith.constant 0 : index
    %10 = vector.load %arg5[%c0_7, %c0_8, %c0_9] : memref<1x32x64xbf16, #tpu.memory_space<vmem>>, vector<1x32x64xbf16>
    %11 = vector.shape_cast %10 : vector<1x32x64xbf16> to vector<32x64xbf16>
    %12 = vector.shape_cast %9 : vector<32x64xbf16> to vector<1x32x64xbf16>
    tpu.vector_store %arg5[%c0_7, %c0_8, %c0_9], %12 {strides = array<i32>} : memref<1x32x64xbf16, #tpu.memory_space<vmem>>, vector<1x32x64xbf16>,
    return
  }
  func.func @transform_0(%arg0: i32, %arg1: i32) -> (i32, i32, i32) {
    %c0_i32 = arith.constant 0 : i32
    %c0_i32_0 = arith.constant 0 : i32
    return %arg0, %c0_i32, %arg1 : i32, i32, i32
  }
  func.func @transform_1(%arg0: i32, %arg1: i32) -> (i32, i32) {
    %c0_i32 = arith.constant 0 : i32
    %c0_i32_0 = arith.constant 0 : i32
    %c0_i32_1 = arith.constant 0 : i32
    return %c0_i32, %c0_i32_0 : i32, i32
  }
  func.func @transform_2(%arg0: i32, %arg1: i32) -> (i32, i32) {
    %c0_i32 = arith.constant 0 : i32
    %c0_i32_0 = arith.constant 0 : i32
    %c0_i32_1 = arith.constant 0 : i32
    return %c0_i32, %c0_i32_0 : i32, i32
  }
  func.func @transform_3(%arg0: i32, %arg1: i32) -> (i32, i32, i32) {
    %c0_i32 = arith.constant 0 : i32
    %c0_i32_0 = arith.constant 0 : i32
    return %arg0, %c0_i32, %arg1 : i32, i32, i32
  }
}

module attributes {stable_mosaic.version = 11 : i64} {
  func.func @_conv_fused_kernel(%arg0: i32, %arg1: i32, %arg2: memref<1x32x64xbf16, #tpu.memory_space<vmem>>, %arg3: memref<2x32xbf16, #tpu.memory_space<vmem>>, %arg4: memref<2x1xf32, #tpu.memory_space<vmem>>, %arg5: memref<1x2x64xf32, #tpu.memory_space<vmem>>) attributes {dimension_semantics = [#tpu.dimension_semantics<parallel>, #tpu.dimension_semantics<parallel>], iteration_bounds = array<i64: 2, 1>, scalar_prefetch = 0 : i64, scratch_operands = 0 : i64, tpu.core_type = #tpu.core_type<tc>, window_params = [{transform_indices = @transform_0, window_bounds = array<i64: 1, 32, 64>}, {pipeline_mode = #tpu.pipeline_mode<synchronous>, transform_indices = @transform_1, window_bounds = array<i64: 2, 32>}, {pipeline_mode = #tpu.pipeline_mode<synchronous>, transform_indices = @transform_2, window_bounds = array<i64: 2, 1>}, {transform_indices = @transform_3, window_bounds = array<i64: 1, 2, 64>}]} {
    %c0 = arith.constant 0 : index
    %c0_0 = arith.constant 0 : index
    %0 = vector.load %arg3[%c0, %c0_0] : memref<2x32xbf16, #tpu.memory_space<vmem>>, vector<2x32xbf16>
    %c0_1 = arith.constant 0 : index
    %c0_2 = arith.constant 0 : index
    %c0_3 = arith.constant 0 : index
    %1 = vector.load %arg2[%c0_1, %c0_2, %c0_3] : memref<1x32x64xbf16, #tpu.memory_space<vmem>>, vector<1x32x64xbf16>
    %2 = vector.shape_cast %1 : vector<1x32x64xbf16> to vector<32x64xbf16>
    %cst = arith.constant dense<0.000000e+00> : vector<2x64xf32>
    %3 = tpu.matmul %0, %2, %cst {dimension_numbers = #tpu.dot_dimension_numbers<[1], [0], [0], [1], [0, 0, 1, 1], [], []>} : vector<2x32xbf16>, vector<32x64xbf16>, vector<2x64xf32> -> vector<2x64xf32>
    %c0_4 = arith.constant 0 : index
    %c0_5 = arith.constant 0 : index
    %4 = vector.load %arg4[%c0_4, %c0_5] : memref<2x1xf32, #tpu.memory_space<vmem>>, vector<2x1xf32>
    %5 = vector.broadcast %4 : vector<2x1xf32> to vector<2x64xf32>
    %6 = arith.addf %3, %5 : vector<2x64xf32>
    %c0_6 = arith.constant 0 : index
    %c0_7 = arith.constant 0 : index
    %c0_8 = arith.constant 0 : index
    %7 = vector.load %arg5[%c0_6, %c0_7, %c0_8] : memref<1x2x64xf32, #tpu.memory_space<vmem>>, vector<1x2x64xf32>
    %8 = vector.shape_cast %7 : vector<1x2x64xf32> to vector<2x64xf32>
    %9 = vector.shape_cast %6 : vector<2x64xf32> to vector<1x2x64xf32>
    tpu.vector_store %arg5[%c0_6, %c0_7, %c0_8], %9 {strides = array<i32>} : memref<1x2x64xf32, #tpu.memory_space<vmem>>, vector<1x2x64xf32>,
    return
  }
  func.func @transform_0(%arg0: i32, %arg1: i32) -> (i32, i32, i32) {
    %c0_i32 = arith.constant 0 : i32
    %c0_i32_0 = arith.constant 0 : i32
    return %arg0, %c0_i32, %arg1 : i32, i32, i32
  }
  func.func @transform_1(%arg0: i32, %arg1: i32) -> (i32, i32) {
    %c0_i32 = arith.constant 0 : i32
    %c0_i32_0 = arith.constant 0 : i32
    %c0_i32_1 = arith.constant 0 : i32
    return %c0_i32, %c0_i32_0 : i32, i32
  }
  func.func @transform_2(%arg0: i32, %arg1: i32) -> (i32, i32) {
    %c0_i32 = arith.constant 0 : i32
    %c0_i32_0 = arith.constant 0 : i32
    %c0_i32_1 = arith.constant 0 : i32
    return %c0_i32, %c0_i32_0 : i32, i32
  }
  func.func @transform_3(%arg0: i32, %arg1: i32) -> (i32, i32, i32) {
    %c0_i32 = arith.constant 0 : i32
    %c0_i32_0 = arith.constant 0 : i32
    return %arg0, %c0_i32, %arg1 : i32, i32, i32
  }
}

module attributes {stable_mosaic.version = 11 : i64} {
  func.func @_bspline_coords_kernel(%arg0: i32, %arg1: memref<4x8x8xf32, #tpu.memory_space<vmem>>, %arg2: memref<16x8xf32, #tpu.memory_space<vmem>>, %arg3: memref<8x16xf32, #tpu.memory_space<vmem>>, %arg4: memref<4x16x16xf32, #tpu.memory_space<vmem>>) attributes {dimension_semantics = [#tpu.dimension_semantics<parallel>], iteration_bounds = array<i64: 1>, scalar_prefetch = 0 : i64, scratch_operands = 0 : i64, tpu.core_type = #tpu.core_type<tc>, window_params = [{pipeline_mode = #tpu.pipeline_mode<synchronous>, transform_indices = @transform_0, window_bounds = array<i64: 4, 8, 8>}, {pipeline_mode = #tpu.pipeline_mode<synchronous>, transform_indices = @transform_1, window_bounds = array<i64: 16, 8>}, {pipeline_mode = #tpu.pipeline_mode<synchronous>, transform_indices = @transform_2, window_bounds = array<i64: 8, 16>}, {pipeline_mode = #tpu.pipeline_mode<synchronous>, transform_indices = @transform_3, window_bounds = array<i64: 4, 16, 16>}]} {
    %c0 = arith.constant 0 : index
    %c0_0 = arith.constant 0 : index
    %0 = vector.load %arg2[%c0, %c0_0] : memref<16x8xf32, #tpu.memory_space<vmem>>, vector<16x8xf32>
    %c0_1 = arith.constant 0 : index
    %c0_2 = arith.constant 0 : index
    %1 = vector.load %arg3[%c0_1, %c0_2] : memref<8x16xf32, #tpu.memory_space<vmem>>, vector<8x16xf32>
    %2 = tpu.iota {dimensions = array<i32: 0>} : vector<16x16xi32>
    %3 = arith.sitofp %2 : vector<16x16xi32> to vector<16x16xf32>
    %4 = tpu.iota {dimensions = array<i32: 1>} : vector<16x16xi32>
    %5 = arith.sitofp %4 : vector<16x16xi32> to vector<16x16xf32>
    %c0_3 = arith.constant 0 : index
    %c0_4 = arith.constant 0 : index
    %c0_5 = arith.constant 0 : index
    %6 = vector.load %arg1[%c0_3, %c0_4, %c0_5] : memref<4x8x8xf32, #tpu.memory_space<vmem>>, vector<1x8x8xf32>
    %7 = vector.shape_cast %6 : vector<1x8x8xf32> to vector<8x8xf32>
    %cst = arith.constant dense<0.000000e+00> : vector<16x8xf32>
    %8 = tpu.matmul %0, %7, %cst {dimension_numbers = #tpu.dot_dimension_numbers<[1], [0], [0], [1], [0, 0, 1, 1], [], []>} : vector<16x8xf32>, vector<8x8xf32>, vector<16x8xf32> -> vector<16x8xf32>
    %cst_6 = arith.constant dense<0.000000e+00> : vector<16x16xf32>
    %9 = tpu.matmul %8, %1, %cst_6 {dimension_numbers = #tpu.dot_dimension_numbers<[1], [0], [0], [1], [0, 0, 1, 1], [], []>} : vector<16x8xf32>, vector<8x16xf32>, vector<16x16xf32> -> vector<16x16xf32>
    %10 = arith.addf %9, %3 : vector<16x16xf32>
    %c0_7 = arith.constant 0 : index
    %c0_8 = arith.constant 0 : index
    %c0_9 = arith.constant 0 : index
    %11 = vector.load %arg4[%c0_7, %c0_8, %c0_9] : memref<4x16x16xf32, #tpu.memory_space<vmem>>, vector<1x16x16xf32>
    %12 = vector.shape_cast %11 : vector<1x16x16xf32> to vector<16x16xf32>
    %13 = vector.shape_cast %10 : vector<16x16xf32> to vector<1x16x16xf32>
    tpu.vector_store %arg4[%c0_7, %c0_8, %c0_9], %13 {strides = array<i32>} : memref<4x16x16xf32, #tpu.memory_space<vmem>>, vector<1x16x16xf32>,
    %c1 = arith.constant 1 : index
    %c0_10 = arith.constant 0 : index
    %c0_11 = arith.constant 0 : index
    %14 = vector.load %arg1[%c1, %c0_10, %c0_11] : memref<4x8x8xf32, #tpu.memory_space<vmem>>, vector<1x8x8xf32>
    %15 = vector.shape_cast %14 : vector<1x8x8xf32> to vector<8x8xf32>
    %cst_12 = arith.constant dense<0.000000e+00> : vector<16x8xf32>
    %16 = tpu.matmul %0, %15, %cst_12 {dimension_numbers = #tpu.dot_dimension_numbers<[1], [0], [0], [1], [0, 0, 1, 1], [], []>} : vector<16x8xf32>, vector<8x8xf32>, vector<16x8xf32> -> vector<16x8xf32>
    %cst_13 = arith.constant dense<0.000000e+00> : vector<16x16xf32>
    %17 = tpu.matmul %16, %1, %cst_13 {dimension_numbers = #tpu.dot_dimension_numbers<[1], [0], [0], [1], [0, 0, 1, 1], [], []>} : vector<16x8xf32>, vector<8x16xf32>, vector<16x16xf32> -> vector<16x16xf32>
    %18 = arith.addf %17, %5 : vector<16x16xf32>
    %c1_14 = arith.constant 1 : index
    %c0_15 = arith.constant 0 : index
    %c0_16 = arith.constant 0 : index
    %19 = vector.load %arg4[%c1_14, %c0_15, %c0_16] : memref<4x16x16xf32, #tpu.memory_space<vmem>>, vector<1x16x16xf32>
    %20 = vector.shape_cast %19 : vector<1x16x16xf32> to vector<16x16xf32>
    %21 = vector.shape_cast %18 : vector<16x16xf32> to vector<1x16x16xf32>
    tpu.vector_store %arg4[%c1_14, %c0_15, %c0_16], %21 {strides = array<i32>} : memref<4x16x16xf32, #tpu.memory_space<vmem>>, vector<1x16x16xf32>,
    %c2 = arith.constant 2 : index
    %c0_17 = arith.constant 0 : index
    %c0_18 = arith.constant 0 : index
    %22 = vector.load %arg1[%c2, %c0_17, %c0_18] : memref<4x8x8xf32, #tpu.memory_space<vmem>>, vector<1x8x8xf32>
    %23 = vector.shape_cast %22 : vector<1x8x8xf32> to vector<8x8xf32>
    %cst_19 = arith.constant dense<0.000000e+00> : vector<16x8xf32>
    %24 = tpu.matmul %0, %23, %cst_19 {dimension_numbers = #tpu.dot_dimension_numbers<[1], [0], [0], [1], [0, 0, 1, 1], [], []>} : vector<16x8xf32>, vector<8x8xf32>, vector<16x8xf32> -> vector<16x8xf32>
    %cst_20 = arith.constant dense<0.000000e+00> : vector<16x16xf32>
    %25 = tpu.matmul %24, %1, %cst_20 {dimension_numbers = #tpu.dot_dimension_numbers<[1], [0], [0], [1], [0, 0, 1, 1], [], []>} : vector<16x8xf32>, vector<8x16xf32>, vector<16x16xf32> -> vector<16x16xf32>
    %26 = arith.addf %25, %3 : vector<16x16xf32>
    %c2_21 = arith.constant 2 : index
    %c0_22 = arith.constant 0 : index
    %c0_23 = arith.constant 0 : index
    %27 = vector.load %arg4[%c2_21, %c0_22, %c0_23] : memref<4x16x16xf32, #tpu.memory_space<vmem>>, vector<1x16x16xf32>
    %28 = vector.shape_cast %27 : vector<1x16x16xf32> to vector<16x16xf32>
    %29 = vector.shape_cast %26 : vector<16x16xf32> to vector<1x16x16xf32>
    tpu.vector_store %arg4[%c2_21, %c0_22, %c0_23], %29 {strides = array<i32>} : memref<4x16x16xf32, #tpu.memory_space<vmem>>, vector<1x16x16xf32>,
    %c3 = arith.constant 3 : index
    %c0_24 = arith.constant 0 : index
    %c0_25 = arith.constant 0 : index
    %30 = vector.load %arg1[%c3, %c0_24, %c0_25] : memref<4x8x8xf32, #tpu.memory_space<vmem>>, vector<1x8x8xf32>
    %31 = vector.shape_cast %30 : vector<1x8x8xf32> to vector<8x8xf32>
    %cst_26 = arith.constant dense<0.000000e+00> : vector<16x8xf32>
    %32 = tpu.matmul %0, %31, %cst_26 {dimension_numbers = #tpu.dot_dimension_numbers<[1], [0], [0], [1], [0, 0, 1, 1], [], []>} : vector<16x8xf32>, vector<8x8xf32>, vector<16x8xf32> -> vector<16x8xf32>
    %cst_27 = arith.constant dense<0.000000e+00> : vector<16x16xf32>
    %33 = tpu.matmul %32, %1, %cst_27 {dimension_numbers = #tpu.dot_dimension_numbers<[1], [0], [0], [1], [0, 0, 1, 1], [], []>} : vector<16x8xf32>, vector<8x16xf32>, vector<16x16xf32> -> vector<16x16xf32>
    %34 = arith.addf %33, %5 : vector<16x16xf32>
    %c3_28 = arith.constant 3 : index
    %c0_29 = arith.constant 0 : index
    %c0_30 = arith.constant 0 : index
    %35 = vector.load %arg4[%c3_28, %c0_29, %c0_30] : memref<4x16x16xf32, #tpu.memory_space<vmem>>, vector<1x16x16xf32>
    %36 = vector.shape_cast %35 : vector<1x16x16xf32> to vector<16x16xf32>
    %37 = vector.shape_cast %34 : vector<16x16xf32> to vector<1x16x16xf32>
    tpu.vector_store %arg4[%c3_28, %c0_29, %c0_30], %37 {strides = array<i32>} : memref<4x16x16xf32, #tpu.memory_space<vmem>>, vector<1x16x16xf32>,
    return
  }
  func.func @transform_0(%arg0: i32) -> (i32, i32, i32) {
    %c0_i32 = arith.constant 0 : i32
    %c0_i32_0 = arith.constant 0 : i32
    %c0_i32_1 = arith.constant 0 : i32
    %c0_i32_2 = arith.constant 0 : i32
    return %c0_i32, %c0_i32_0, %c0_i32_1 : i32, i32, i32
  }
  func.func @transform_1(%arg0: i32) -> (i32, i32) {
    %c0_i32 = arith.constant 0 : i32
    %c0_i32_0 = arith.constant 0 : i32
    %c0_i32_1 = arith.constant 0 : i32
    return %c0_i32, %c0_i32_0 : i32, i32
  }
  func.func @transform_2(%arg0: i32) -> (i32, i32) {
    %c0_i32 = arith.constant 0 : i32
    %c0_i32_0 = arith.constant 0 : i32
    %c0_i32_1 = arith.constant 0 : i32
    return %c0_i32, %c0_i32_0 : i32, i32
  }
  func.func @transform_3(%arg0: i32) -> (i32, i32, i32) {
    %c0_i32 = arith.constant 0 : i32
    %c0_i32_0 = arith.constant 0 : i32
    %c0_i32_1 = arith.constant 0 : i32
    %c0_i32_2 = arith.constant 0 : i32
    return %c0_i32, %c0_i32_0, %c0_i32_1 : i32, i32, i32
  }
}

module attributes {stable_mosaic.version = 11 : i64} {
  func.func @_warp_kernel(%arg0: i32, %arg1: i32, %arg2: memref<1x2x256xf32, #tpu.memory_space<vmem>>, %arg3: memref<1x16x16xf32, #tpu.memory_space<vmem>>, %arg4: memref<1x1x256xf32, #tpu.memory_space<vmem>>) attributes {dimension_semantics = [#tpu.dimension_semantics<parallel>, #tpu.dimension_semantics<parallel>], iteration_bounds = array<i64: 2, 1>, scalar_prefetch = 0 : i64, scratch_operands = 0 : i64, tpu.core_type = #tpu.core_type<tc>, window_params = [{transform_indices = @transform_0, window_bounds = array<i64: 1, 2, 256>}, {transform_indices = @transform_1, window_bounds = array<i64: 1, 16, 16>}, {transform_indices = @transform_2, window_bounds = array<i64: 1, 1, 256>}]} {
    %c0 = arith.constant 0 : index
    %c0_0 = arith.constant 0 : index
    %c0_1 = arith.constant 0 : index
    %0 = vector.load %arg2[%c0, %c0_0, %c0_1] : memref<1x2x256xf32, #tpu.memory_space<vmem>>, vector<1x1x256xf32>
    %1 = vector.shape_cast %0 : vector<1x1x256xf32> to vector<1x256xf32>
    %c0_2 = arith.constant 0 : index
    %c1 = arith.constant 1 : index
    %c0_3 = arith.constant 0 : index
    %2 = vector.load %arg2[%c0_2, %c1, %c0_3] : memref<1x2x256xf32, #tpu.memory_space<vmem>>, vector<1x1x256xf32>
    %3 = vector.shape_cast %2 : vector<1x1x256xf32> to vector<1x256xf32>
    %4 = tpu.iota {dimensions = array<i32: 0>} : vector<16x1xi32>
    %5 = arith.sitofp %4 : vector<16x1xi32> to vector<16x1xf32>
    %6 = tpu.iota {dimensions = array<i32: 0>} : vector<16x1xi32>
    %7 = arith.sitofp %6 : vector<16x1xi32> to vector<16x1xf32>
    %8 = vector.broadcast %5 : vector<16x1xf32> to vector<16x256xf32>
    %9 = vector.broadcast %1 : vector<1x256xf32> to vector<16x256xf32>
    %10 = arith.subf %8, %9 : vector<16x256xf32>
    %11 = math.absf %10 : vector<16x256xf32>
    %cst = arith.constant 1.000000e+00 : f32
    %12 = vector.broadcast %cst : f32 to vector<16x256xf32>
    %13 = arith.subf %12, %11 : vector<16x256xf32>
    %cst_4 = arith.constant 0.000000e+00 : f32
    %14 = vector.broadcast %cst_4 : f32 to vector<16x256xf32>
    %15 = arith.maximumf %13, %14 : vector<16x256xf32>
    %16 = vector.broadcast %7 : vector<16x1xf32> to vector<16x256xf32>
    %17 = vector.broadcast %3 : vector<1x256xf32> to vector<16x256xf32>
    %18 = arith.subf %16, %17 : vector<16x256xf32>
    %19 = math.absf %18 : vector<16x256xf32>
    %cst_5 = arith.constant 1.000000e+00 : f32
    %20 = vector.broadcast %cst_5 : f32 to vector<16x256xf32>
    %21 = arith.subf %20, %19 : vector<16x256xf32>
    %cst_6 = arith.constant 0.000000e+00 : f32
    %22 = vector.broadcast %cst_6 : f32 to vector<16x256xf32>
    %23 = arith.maximumf %21, %22 : vector<16x256xf32>
    %c0_7 = arith.constant 0 : index
    %c0_8 = arith.constant 0 : index
    %c0_9 = arith.constant 0 : index
    %24 = vector.load %arg3[%c0_7, %c0_8, %c0_9] : memref<1x16x16xf32, #tpu.memory_space<vmem>>, vector<1x16x16xf32>
    %25 = vector.shape_cast %24 : vector<1x16x16xf32> to vector<16x16xf32>
    %cst_10 = arith.constant dense<0.000000e+00> : vector<16x256xf32>
    %26 = tpu.matmul %25, %15, %cst_10 {dimension_numbers = #tpu.dot_dimension_numbers<[1], [0], [0], [1], [0, 0, 1, 1], [], []>} : vector<16x16xf32>, vector<16x256xf32>, vector<16x256xf32> -> vector<16x256xf32>
    %27 = arith.mulf %23, %26 : vector<16x256xf32>
    %cst_11 = arith.constant dense<0.000000e+00> : vector<256xf32>
    %28 = vector.multi_reduction <add>, %27, %cst_11 [0] : vector<16x256xf32> to vector<256xf32>
    %29 = vector.shape_cast %28 : vector<256xf32> to vector<1x256xf32>
    %c0_12 = arith.constant 0 : index
    %c0_13 = arith.constant 0 : index
    %c0_14 = arith.constant 0 : index
    %30 = vector.load %arg4[%c0_12, %c0_13, %c0_14] : memref<1x1x256xf32, #tpu.memory_space<vmem>>, vector<1x1x256xf32>
    %31 = vector.shape_cast %30 : vector<1x1x256xf32> to vector<1x256xf32>
    %32 = vector.shape_cast %29 : vector<1x256xf32> to vector<1x1x256xf32>
    tpu.vector_store %arg4[%c0_12, %c0_13, %c0_14], %32 {strides = array<i32>} : memref<1x1x256xf32, #tpu.memory_space<vmem>>, vector<1x1x256xf32>,
    return
  }
  func.func @transform_0(%arg0: i32, %arg1: i32) -> (i32, i32, i32) {
    %c0_i32 = arith.constant 0 : i32
    %c0_i32_0 = arith.constant 0 : i32
    return %arg0, %c0_i32, %arg1 : i32, i32, i32
  }
  func.func @transform_1(%arg0: i32, %arg1: i32) -> (i32, i32, i32) {
    %c0_i32 = arith.constant 0 : i32
    %c0_i32_0 = arith.constant 0 : i32
    %c0_i32_1 = arith.constant 0 : i32
    return %arg0, %c0_i32, %c0_i32_0 : i32, i32, i32
  }
  func.func @transform_2(%arg0: i32, %arg1: i32) -> (i32, i32, i32) {
    %c0_i32 = arith.constant 0 : i32
    %c0_i32_0 = arith.constant 0 : i32
    return %arg0, %c0_i32, %arg1 : i32, i32, i32
  }
}

</mosaic_0001>

<llo_original>
// kernel: lit_dirnet_forward.9
$region0: #{lit_dirnet_forward.9}
  #allocation0 [shape = 'u32[]', space=smem, size = 0x4, offset = 0x4, fixed_abs, tag = 'smem constant byte address 0x4 - core index']
  #allocation1 [shape = 'u32[72,128]{1,0:T(1,128)}', space=vmem, size = 0x9000, scoped, tag = 'internal scratch']
  %s0 = inlined_call_operand.vmem [shape: bf16[2,18,256], index: 0, kind: input, shape index: {}]
  %s1 = inlined_call_operand.vmem [shape: bf16[32,18], index: 1, kind: input, shape index: {}]
  %s2 = inlined_call_operand.vmem [shape: f32[32,1], index: 2, kind: input, shape index: {}]
  %s3 = inlined_call_operand.vmem [shape: bf16[2,32,256], index: 3, kind: output, shape index: {}]
  %s4 = sld [smem:[#allocation0]]
  $region45: #{lit_dirnet_forward.9} parent=0
    _
  %s6 = ssub.s32 1, %s4
  %s7 = scalar_select 0, %s6, %s4
  loop: start=0, step=1, limit=4
  $region2: #{lit_dirnet_forward.9} parent=0 // loop_pre_header
    _
  $region3: #{lit_dirnet_forward.9} parent=0 // loop_header
    %s9 = sphi 0, %s13
    %p10 = scmp.ge.s32.totalorder %s9, 4
    %s16 = sphi 0, %s28
    %s17 = sphi 0, %s24
    %s18 = sphi 0, %s16
    %s19 = sphi 0, %s17
    %s20 = sphi 0, %s18
    %s21 = sphi 0, %s19
    %s33 = sphi 0, %s35
    %s36 = sphi 0, %s33
    %s37 = sphi 0, %s36
    %s53 = sphi 0, %s37
    %s57 = sphi 0, %s57
    %s59 = sphi 0, %s57
    %s60 = sphi 0, %s59
    %s74 = sphi 0, %s60
    %s78 = sphi 0, %s78
    %s80 = sphi 0, %s78
    %s81 = sphi 0, %s80
    %s95 = sphi 0, %s81
    %s103 = sphi 0, %s105
    %s106 = sphi 0, %s103
    %s107 = sphi 0, %s106
    %s123 = sphi 0, %s107
  $region4: #{lit_dirnet_forward.9} parent=0 // loop_header_branch
    %12 = sbr.rel (%p10) target = $region8
  $region5: #{lit_dirnet_forward.9} parent=0 // loop_body
    %s14 = ssub.s32 %s9, 1
    %s15 = ssub.s32 %s9, 2
    %s22 = sadd.s32 1, %s17
    %p23 = scmp.ge.s32.totalorder %s22, 1
    %s24 = scalar_select %p23, 0, %s22
    %s25 = sadd.s32 1, %s16
    %s26 = scalar_select %p23, %s25, %s16
    %p27 = scmp.ge.s32.totalorder %s26, 2
    %s28 = scalar_select %p27, 0, %s26
    %s29 = ssub.s32 %s16, %s28
    %s30 = ssub.s32 %s17, %s24
    %s31 = sor.u32 %s29, %s30
    %p32 = scmp.eq.s32.totalorder %s31, 0
    %s34 = sadd.s32 %s33, 1
    %s35 = scalar_select %p32, %s33, %s34
    %p38 = pneg %p32
    %p39 = scmp.eq.s32.totalorder %s9, 1
    %p40 = por %p38, %p39
    %p41 = scmp.ne.s32.totalorder %s33, %s36
    %p42 = scmp.eq.s32.totalorder %s9, 0
    %p43 = por %p41, %p42
    %p44 = scmp.ne.s32.totalorder %s33, %s36
    %p45 = scmp.eq.s32.totalorder %s14, 1
    %p46 = por %p44, %p45
    %p47 = scmp.ne.s32.totalorder %s36, %s37
    %p48 = scmp.eq.s32.totalorder %s14, 0
    %p49 = por %p47, %p48
    %p50 = scmp.ne.s32.totalorder %s36, %s37
    %p51 = scmp.eq.s32.totalorder %s15, 1
    %p52 = por %p50, %p51
    %p54 = scmp.ne.s32.totalorder %s37, %s53
    %p55 = scmp.eq.s32.totalorder %s15, 0
    %p56 = por %p54, %p55
    %s58 = sadd.s32 %s57, 1
    %p61 = scmp.eq.s32.totalorder %s9, 1
    %p62 = scmp.ne.s32.totalorder %s57, %s59
    %p63 = scmp.eq.s32.totalorder %s9, 0
    %p64 = por %p62, %p63
    %p65 = scmp.ne.s32.totalorder %s57, %s59
    %p66 = scmp.eq.s32.totalorder %s14, 1
    %p67 = por %p65, %p66
    %p68 = scmp.ne.s32.totalorder %s59, %s60
    %p69 = scmp.eq.s32.totalorder %s14, 0
    %p70 = por %p68, %p69
    %p71 = scmp.ne.s32.totalorder %s59, %s60
    %p72 = scmp.eq.s32.totalorder %s15, 1
    %p73 = por %p71, %p72
    %p75 = scmp.ne.s32.totalorder %s60, %s74
    %p76 = scmp.eq.s32.totalorder %s15, 0
    %p77 = por %p75, %p76
    %s79 = sadd.s32 %s78, 1
    %p82 = scmp.eq.s32.totalorder %s9, 1
    %p83 = scmp.ne.s32.totalorder %s78, %s80
    %p84 = scmp.eq.s32.totalorder %s9, 0
    %p85 = por %p83, %p84
    %p86 = scmp.ne.s32.totalorder %s78, %s80
    %p87 = scmp.eq.s32.totalorder %s14, 1
    %p88 = por %p86, %p87
    %p89 = scmp.ne.s32.totalorder %s80, %s81
    %p90 = scmp.eq.s32.totalorder %s14, 0
    %p91 = por %p89, %p90
    %p92 = scmp.ne.s32.totalorder %s80, %s81
    %p93 = scmp.eq.s32.totalorder %s15, 1
    %p94 = por %p92, %p93
    %p96 = scmp.ne.s32.totalorder %s81, %s95
    %p97 = scmp.eq.s32.totalorder %s15, 0
    %p98 = por %p96, %p97
    %s99 = ssub.s32 %s16, %s28
    %s100 = ssub.s32 %s17, %s24
    %s101 = sor.u32 %s99, %s100
    %p102 = scmp.eq.s32.totalorder %s101, 0
    %s104 = sadd.s32 %s103, 1
    %s105 = scalar_select %p102, %s103, %s104
    %p108 = pneg %p102
    %p109 = scmp.eq.s32.totalorder %s9, 1
    %p110 = por %p108, %p109
    %p111 = scmp.ne.s32.totalorder %s103, %s106
    %p112 = scmp.eq.s32.totalorder %s9, 0
    %p113 = por %p111, %p112
    %p114 = scmp.ne.s32.totalorder %s103, %s106
    %p115 = scmp.eq.s32.totalorder %s14, 1
    %p116 = por %p114, %p115
    %p117 = scmp.ne.s32.totalorder %s106, %s107
    %p118 = scmp.eq.s32.totalorder %s14, 0
    %p119 = por %p117, %p118
    %p120 = scmp.ne.s32.totalorder %s106, %s107
    %p121 = scmp.eq.s32.totalorder %s15, 1
    %p122 = por %p120, %p121
    %p124 = scmp.ne.s32.totalorder %s107, %s123
    %p125 = scmp.eq.s32.totalorder %s15, 0
    %p126 = por %p124, %p125
    %p127 = scmp.le.s32.totalorder 1, %s9
    %p128 = scmp.lt.s32.totalorder %s9, 3
    %p129 = pnand %p127, %p128
    %p130 = pneg %p129
    // Predicated region
    $region9: #{lit_dirnet_forward.9} parent=5 // pred_check
      _
    $region10: #{lit_dirnet_forward.9} parent=5 // pred_check_branch
      %132 = sbr.rel (%p129) target = $region12
    $region11: #{lit_dirnet_forward.9} parent=5 // pred_region
      %s133 = ssub.s32 %s9, 1
      // Predicated region
      $region13: #{lit_dirnet_forward.9} parent=11 // pred_check
        %p134 = pneg %p70
      $region14: #{lit_dirnet_forward.9} parent=11 // pred_check_branch
        %136 = sbr.rel (%p134) target = $region16
      $region15: #{lit_dirnet_forward.9} parent=11 // pred_region
        _
      $region16: #{lit_dirnet_forward.9} parent=11 // pred_fallthru
        _
      // Predicated region
      $region17: #{lit_dirnet_forward.9} parent=11 // pred_check
        %p137 = pneg %p91
      $region18: #{lit_dirnet_forward.9} parent=11 // pred_check_branch
        %139 = sbr.rel (%p137) target = $region20
      $region19: #{lit_dirnet_forward.9} parent=11 // pred_region
        _
      $region20: #{lit_dirnet_forward.9} parent=11 // pred_fallthru
        _
    $region12: #{lit_dirnet_forward.9} parent=5 // pred_fallthru
      _
    %p140 = scmp.lt.s32.totalorder %s9, 2
    // Predicated region
    $region21: #{lit_dirnet_forward.9} parent=5 // pred_check
      %p141 = pneg %p140
    $region22: #{lit_dirnet_forward.9} parent=5 // pred_check_branch
      %143 = sbr.rel (%p141) target = $region24
    $region23: #{lit_dirnet_forward.9} parent=5 // pred_region
      // Predicated region
      $region25: #{lit_dirnet_forward.9} parent=23 // pred_check
        %p144 = pneg %p43
      $region26: #{lit_dirnet_forward.9} parent=23 // pred_check_branch
        %146 = sbr.rel (%p144) target = $region28
      $region27: #{lit_dirnet_forward.9} parent=23 // pred_region
        %s147 = smul.u32 2, %s17
        %p148 = scmp.lt.s32.totalorder %s16, 1
        %s149 = scalar_select %p148, %s16, 1
        %p150 = scmp.lt.s32.totalorder %s147, 1
        %s151 = scalar_select %p150, %s147, 1
        %s152 = smul.addr %s149, 6
        %s153 = sadd.s32 %s151, %s152
        %s154 = smul.addr %s153, 4
        %s155 = scalar_lea.vmem %s0, %s154
        %s156 = smul.u32 2, %s17
      $region28: #{lit_dirnet_forward.9} parent=23 // pred_fallthru
        _
    $region24: #{lit_dirnet_forward.9} parent=5 // pred_fallthru
      _
    %p157 = scmp.le.s32.totalorder 1, %s9
    %p158 = scmp.lt.s32.totalorder %s9, 3
    %p159 = pnand %p157, %p158
    %p160 = pneg %p159
    // Predicated region
    $region29: #{lit_dirnet_forward.9} parent=5 // pred_check
      _
    $region30: #{lit_dirnet_forward.9} parent=5 // pred_check_branch
      %162 = sbr.rel (%p159) target = $region32
    $region31: #{lit_dirnet_forward.9} parent=5 // pred_region
      %s163 = ssub.s32 %s9, 1
      %s164 = smul.u32 2, %s19
      %p165 = scmp.lt.s32.totalorder %s18, 1
      %s166 = scalar_select %p165, %s18, 1
      %p167 = scmp.lt.s32.totalorder %s164, 1
      %s168 = scalar_select %p167, %s164, 1
      %s169 = smul.addr %s166, 6
      %s170 = sadd.s32 %s168, %s169
      %s171 = smul.addr %s170, 4
      %s172 = scalar_lea.vmem %s0, %s171
      %p173 = pneg %p49
      %p174 = pneg %p46
      %p175 = pneg %p70
      %p176 = pneg %p67
      %p177 = pneg %p91
      %p178 = pneg %p88
      %p179 = pneg %p119
      %p180 = pneg %p116
      %s181 = smul.u32 2, %s19
      %p182 = scmp.lt.s32.totalorder %s18, 1
      %s183 = scalar_select %p182, %s18, 1
      %p184 = scmp.lt.s32.totalorder %s181, 1
      %s185 = scalar_select %p184, %s181, 1
      %s186 = smul.addr %s183, 8
      %s187 = sadd.s32 %s185, %s186
      %s188 = smul.addr %s187, 4
      %s189 = scalar_lea.vmem %s3, %s188
      %s190 = smul.u32 2, %s19
      %p191 = scmp.lt.s32.totalorder %s18, 1
      %s192 = scalar_select %p191, %s18, 1
      %p193 = scmp.lt.s32.totalorder %s190, 1
      %s194 = scalar_select %p193, %s190, 1
      %s195 = smul.addr %s192, 6
      %s196 = sadd.s32 %s194, %s195
      %s197 = smul.addr %s196, 4
      %s198 = scalar_lea.vmem %s0, %s197
      %s199 = smul.u32 2, %s19
      %s200 = smul.u32 2, %s19
      %p201 = scmp.lt.s32.totalorder %s18, 1
      %s202 = scalar_select %p201, %s18, 1
      %p203 = scmp.lt.s32.totalorder %s200, 1
      %s204 = scalar_select %p203, %s200, 1
      %s205 = smul.addr %s202, 8
      %s206 = sadd.s32 %s204, %s205
      %s207 = smul.addr %s206, 4
      %s208 = scalar_lea.vmem %s3, %s207
      %s209 = smul.u32 2, %s19
      %v211 = vld [vmem:[%s1] sm:$0xf]
      %v212 = vld [vmem:[%s1 + $0x4] sm:$0xf]
      %v213 = vld [vmem:[%s1 + $0x8] sm:$0xf]
      %v214 = vld [vmem:[%s1 + $0xc] sm:$0xf]
      %v215 = vld [vmem:[%s198] sm:$0xff]
      %v216 = vld [vmem:[%s198 + $0x8] sm:$0xff]
      %v217 = vld [vmem:[%s198 + $0x10] sm:$0x11]
      %v218 = vld [vmem:[%s2] sm:$0xff]
      %v219 = vld [vmem:[%s2 + $0x8] sm:$0xff]
      %v220 = vld [vmem:[%s2 + $0x10] sm:$0xff]
      %v221 = vld [vmem:[%s2 + $0x18] sm:$0xff]
      %223 = vset.pattern.permute.xlu0 0
      %224 = vperm.xlu0 %223, %v218
      %v225 = vpop.permute.xlu0 %224
      %228 = vset.pattern.permute.xlu0 0
      %229 = vperm.xlu0 %228, %v219
      %v230 = vpop.permute.xlu0 %229
      %233 = vset.pattern.permute.xlu0 0
      %234 = vperm.xlu0 %233, %v220
      %v235 = vpop.permute.xlu0 %234
      %238 = vset.pattern.permute.xlu0 0
      %239 = vperm.xlu0 %238, %v221
      %v240 = vpop.permute.xlu0 %239
      %v246 = vunpack.c.l.b16 %v211
      %v247 = vunpack.c.l.b16 %v212
      %v248 = vunpack.c.l.b16 %v213
      %v249 = vunpack.c.l.b16 %v214
      %v250 = vpack.c.b16 %v247, %v246
      %v251 = vpack.c.b16 %v249, %v248
      %v255 = vunpack.c.l.b16 %v215
      %v256 = vunpack.c.h.b16 %v215
      %v257 = vunpack.c.l.b16 %v216
      %v258 = vunpack.c.h.b16 %v216
      %v259 = vunpack.c.l.b16 %v217
      %v260 = vunpack.c.h.b16 %v217
      %v261 = vpack.c.b16 %v257, %v255
      %v262 = vpack.c.b16 %v258, %v256
      %v263 = vpack.c.b16 %v259, %v259
      %v264 = vpack.c.b16 %v260, %v260
      %vm267 = vcmask 146432
      %v269 = vsel %vm267, %v250, 0
      %v272 = vsel %vm267, %v251, 0
      %vm274 = vcmask 1040384
      %v276 = vsel %vm274, %v263, 0
      %v279 = vsel %vm274, %v264, 0
      %281 = vmatpush.bf16.msra.mxu0 0
      %282 = vmatpush.bf16.msra.mxu0 0
      %283 = vmatpush.bf16.msra.mxu0 0
      %284 = vmatpush.bf16.msra.mxu0 0
      %285 = vmatpush.bf16.msra.mxu0 0
      %286 = vmatpush.bf16.msra.mxu0 0
      %287 = vmatpush.bf16.msra.mxu0 %v276
      %288 = vmatpush.bf16.msra.mxu0 %v261
      %289 = vmatmul.bf16.gmra.mxu0 %v269
      %v290 = vpop.f32.mrf.mxu0
      %v291 = vadd.f32 %v225, %v290
      %v292 = vpop.f32.mrf.mxu0
      %v293 = vadd.f32 %v230, %v292
      %294 = vmatmul.bf16.gmra.mxu0 %v272
      %v295 = vpop.f32.mrf.mxu0
      %v296 = vadd.f32 %v235, %v295
      %v297 = vpop.f32.mrf.mxu0
      %v298 = vadd.f32 %v240, %v297
      %299 = vdwg.mxu0
      %300 = vmatpush.bf16.msra.mxu0 0
      %301 = vmatpush.bf16.msra.mxu0 0
      %302 = vmatpush.bf16.msra.mxu0 0
      %303 = vmatpush.bf16.msra.mxu0 0
      %304 = vmatpush.bf16.msra.mxu0 0
      %305 = vmatpush.bf16.msra.mxu0 0
      %306 = vmatpush.bf16.msra.mxu0 %v279
      %307 = vmatpush.bf16.msra.mxu0 %v262
      %308 = vmatmul.bf16.gmra.mxu0 %v269
      %v309 = vpop.f32.mrf.mxu0
      %v310 = vadd.f32 %v225, %v309
      %v311 = vpop.f32.mrf.mxu0
      %v312 = vadd.f32 %v230, %v311
      %313 = vmatmul.bf16.gmra.mxu0 %v272
      %v314 = vpop.f32.mrf.mxu0
      %v315 = vadd.f32 %v235, %v314
      %v316 = vpop.f32.mrf.mxu0
      %v317 = vadd.f32 %v240, %v316
      %318 = vdwg.mxu0
      %v319 = vmax.f32 %v291, 0.0
      %v320 = vmax.f32 %v310, 0.0
      %v321 = vmax.f32 %v293, 0.0
      %v322 = vmax.f32 %v312, 0.0
      %v323 = vmax.f32 %v296, 0.0
      %v324 = vmax.f32 %v315, 0.0
      %v325 = vmax.f32 %v298, 0.0
      %v326 = vmax.f32 %v317, 0.0
      %v327 = vpack.c.bf16 %v320, %v319
      %v328 = vpack.c.bf16 %v322, %v321
      %v329 = vpack.c.bf16 %v324, %v323
      %v330 = vpack.c.bf16 %v326, %v325
      %331 = vst [vmem:[%s208] sm:$0xff] %v327
      %332 = vst [vmem:[%s208 + $0x8] sm:$0xff] %v328
      %333 = vst [vmem:[%s208 + $0x10] sm:$0xff] %v329
      %334 = vst [vmem:[%s208 + $0x18] sm:$0xff] %v330
      %s335 = smul.u32 2, %s19
      %p336 = scmp.lt.s32.totalorder %s18, 1
      %s337 = scalar_select %p336, %s18, 1
      %p338 = scmp.lt.s32.totalorder %s335, 1
      %s339 = scalar_select %p338, %s335, 1
      %s340 = smul.addr %s337, 8
      %s341 = sadd.s32 %s339, %s340
      %s342 = smul.addr %s341, 4
      %s343 = scalar_lea.vmem %s3, %s342
      // Predicated region
      $region33: #{lit_dirnet_forward.9} parent=31 // pred_check
        %p344 = pneg %p116
      $region34: #{lit_dirnet_forward.9} parent=31 // pred_check_branch
        %346 = sbr.rel (%p344) target = $region36
      $region35: #{lit_dirnet_forward.9} parent=31 // pred_region
        %s347 = smul.u32 2, %s19
      $region36: #{lit_dirnet_forward.9} parent=31 // pred_fallthru
        _
    $region32: #{lit_dirnet_forward.9} parent=5 // pred_fallthru
      _
    %p348 = scmp.le.s32.totalorder 2, %s9
    // Predicated region
    $region37: #{lit_dirnet_forward.9} parent=5 // pred_check
      %p349 = pneg %p348
    $region38: #{lit_dirnet_forward.9} parent=5 // pred_check_branch
      %351 = sbr.rel (%p349) target = $region40
    $region39: #{lit_dirnet_forward.9} parent=5 // pred_region
      %s352 = ssub.s32 %s9, 2
      // Predicated region
      $region41: #{lit_dirnet_forward.9} parent=39 // pred_check
        %p353 = pneg %p122
      $region42: #{lit_dirnet_forward.9} parent=39 // pred_check_branch
        %355 = sbr.rel (%p353) target = $region44
      $region43: #{lit_dirnet_forward.9} parent=39 // pred_region
        %s356 = smul.u32 2, %s21
        %p357 = scmp.lt.s32.totalorder %s20, 1
        %s358 = scalar_select %p357, %s20, 1
        %p359 = scmp.lt.s32.totalorder %s356, 1
        %s360 = scalar_select %p359, %s356, 1
        %s361 = smul.addr %s358, 8
        %s362 = sadd.s32 %s360, %s361
        %s363 = smul.addr %s362, 4
        %s364 = scalar_lea.vmem %s3, %s363
      $region44: #{lit_dirnet_forward.9} parent=39 // pred_fallthru
        _
    $region40: #{lit_dirnet_forward.9} parent=5 // pred_fallthru
      _
  $region6: #{lit_dirnet_forward.9} parent=0 // loop_footer
    %s13 = sadd.s32 1, %s9
  $region7: #{lit_dirnet_forward.9} parent=0 // loop_footer_branch
    %8 = sbr.rel target = $region3
  $region8: #{lit_dirnet_forward.9} parent=0 // loop_exit
    _

// kernel: lit_dirnet_forward.10
$region0: #{lit_dirnet_forward.10}
  #allocation0 [shape = 'u32[]', space=smem, size = 0x4, offset = 0x4, fixed_abs, tag = 'smem constant byte address 0x4 - core index']
  #allocation1 [shape = 'u32[72,128]{1,0:T(1,128)}', space=vmem, size = 0x9000, scoped, tag = 'internal scratch']
  %s0 = inlined_call_operand.vmem [shape: bf16[2,288,64], index: 0, kind: input, shape index: {}]
  %s1 = inlined_call_operand.vmem [shape: bf16[32,288], index: 1, kind: input, shape index: {}]
  %s2 = inlined_call_operand.vmem [shape: f32[32,1], index: 2, kind: input, shape index: {}]
  %s3 = inlined_call_operand.vmem [shape: bf16[2,32,64], index: 3, kind: output, shape index: {}]
  %s4 = sld [smem:[#allocation0]]
  $region45: #{lit_dirnet_forward.10} parent=0
    _
  %s6 = ssub.s32 1, %s4
  %s7 = scalar_select 0, %s6, %s4
  loop: start=0, step=1, limit=4
  $region2: #{lit_dirnet_forward.10} parent=0 // loop_pre_header
    _
  $region3: #{lit_dirnet_forward.10} parent=0 // loop_header
    %s9 = sphi 0, %s13
    %p10 = scmp.ge.s32.totalorder %s9, 4
    %s16 = sphi 0, %s28
    %s17 = sphi 0, %s24
    %s18 = sphi 0, %s16
    %s19 = sphi 0, %s17
    %s20 = sphi 0, %s18
    %s21 = sphi 0, %s19
    %s33 = sphi 0, %s35
    %s36 = sphi 0, %s33
    %s37 = sphi 0, %s36
    %s53 = sphi 0, %s37
    %s57 = sphi 0, %s57
    %s59 = sphi 0, %s57
    %s60 = sphi 0, %s59
    %s74 = sphi 0, %s60
    %s78 = sphi 0, %s78
    %s80 = sphi 0, %s78
    %s81 = sphi 0, %s80
    %s95 = sphi 0, %s81
    %s103 = sphi 0, %s105
    %s106 = sphi 0, %s103
    %s107 = sphi 0, %s106
    %s123 = sphi 0, %s107
  $region4: #{lit_dirnet_forward.10} parent=0 // loop_header_branch
    %12 = sbr.rel (%p10) target = $region8
  $region5: #{lit_dirnet_forward.10} parent=0 // loop_body
    %s14 = ssub.s32 %s9, 1
    %s15 = ssub.s32 %s9, 2
    %s22 = sadd.s32 1, %s17
    %p23 = scmp.ge.s32.totalorder %s22, 1
    %s24 = scalar_select %p23, 0, %s22
    %s25 = sadd.s32 1, %s16
    %s26 = scalar_select %p23, %s25, %s16
    %p27 = scmp.ge.s32.totalorder %s26, 2
    %s28 = scalar_select %p27, 0, %s26
    %s29 = ssub.s32 %s16, %s28
    %s30 = ssub.s32 %s17, %s24
    %s31 = sor.u32 %s29, %s30
    %p32 = scmp.eq.s32.totalorder %s31, 0
    %s34 = sadd.s32 %s33, 1
    %s35 = scalar_select %p32, %s33, %s34
    %p38 = pneg %p32
    %p39 = scmp.eq.s32.totalorder %s9, 1
    %p40 = por %p38, %p39
    %p41 = scmp.ne.s32.totalorder %s33, %s36
    %p42 = scmp.eq.s32.totalorder %s9, 0
    %p43 = por %p41, %p42
    %p44 = scmp.ne.s32.totalorder %s33, %s36
    %p45 = scmp.eq.s32.totalorder %s14, 1
    %p46 = por %p44, %p45
    %p47 = scmp.ne.s32.totalorder %s36, %s37
    %p48 = scmp.eq.s32.totalorder %s14, 0
    %p49 = por %p47, %p48
    %p50 = scmp.ne.s32.totalorder %s36, %s37
    %p51 = scmp.eq.s32.totalorder %s15, 1
    %p52 = por %p50, %p51
    %p54 = scmp.ne.s32.totalorder %s37, %s53
    %p55 = scmp.eq.s32.totalorder %s15, 0
    %p56 = por %p54, %p55
    %s58 = sadd.s32 %s57, 1
    %p61 = scmp.eq.s32.totalorder %s9, 1
    %p62 = scmp.ne.s32.totalorder %s57, %s59
    %p63 = scmp.eq.s32.totalorder %s9, 0
    %p64 = por %p62, %p63
    %p65 = scmp.ne.s32.totalorder %s57, %s59
    %p66 = scmp.eq.s32.totalorder %s14, 1
    %p67 = por %p65, %p66
    %p68 = scmp.ne.s32.totalorder %s59, %s60
    %p69 = scmp.eq.s32.totalorder %s14, 0
    %p70 = por %p68, %p69
    %p71 = scmp.ne.s32.totalorder %s59, %s60
    %p72 = scmp.eq.s32.totalorder %s15, 1
    %p73 = por %p71, %p72
    %p75 = scmp.ne.s32.totalorder %s60, %s74
    %p76 = scmp.eq.s32.totalorder %s15, 0
    %p77 = por %p75, %p76
    %s79 = sadd.s32 %s78, 1
    %p82 = scmp.eq.s32.totalorder %s9, 1
    %p83 = scmp.ne.s32.totalorder %s78, %s80
    %p84 = scmp.eq.s32.totalorder %s9, 0
    %p85 = por %p83, %p84
    %p86 = scmp.ne.s32.totalorder %s78, %s80
    %p87 = scmp.eq.s32.totalorder %s14, 1
    %p88 = por %p86, %p87
    %p89 = scmp.ne.s32.totalorder %s80, %s81
    %p90 = scmp.eq.s32.totalorder %s14, 0
    %p91 = por %p89, %p90
    %p92 = scmp.ne.s32.totalorder %s80, %s81
    %p93 = scmp.eq.s32.totalorder %s15, 1
    %p94 = por %p92, %p93
    %p96 = scmp.ne.s32.totalorder %s81, %s95
    %p97 = scmp.eq.s32.totalorder %s15, 0
    %p98 = por %p96, %p97
    %s99 = ssub.s32 %s16, %s28
    %s100 = ssub.s32 %s17, %s24
    %s101 = sor.u32 %s99, %s100
    %p102 = scmp.eq.s32.totalorder %s101, 0
    %s104 = sadd.s32 %s103, 1
    %s105 = scalar_select %p102, %s103, %s104
    %p108 = pneg %p102
    %p109 = scmp.eq.s32.totalorder %s9, 1
    %p110 = por %p108, %p109
    %p111 = scmp.ne.s32.totalorder %s103, %s106
    %p112 = scmp.eq.s32.totalorder %s9, 0
    %p113 = por %p111, %p112
    %p114 = scmp.ne.s32.totalorder %s103, %s106
    %p115 = scmp.eq.s32.totalorder %s14, 1
    %p116 = por %p114, %p115
    %p117 = scmp.ne.s32.totalorder %s106, %s107
    %p118 = scmp.eq.s32.totalorder %s14, 0
    %p119 = por %p117, %p118
    %p120 = scmp.ne.s32.totalorder %s106, %s107
    %p121 = scmp.eq.s32.totalorder %s15, 1
    %p122 = por %p120, %p121
    %p124 = scmp.ne.s32.totalorder %s107, %s123
    %p125 = scmp.eq.s32.totalorder %s15, 0
    %p126 = por %p124, %p125
    %p127 = scmp.le.s32.totalorder 1, %s9
    %p128 = scmp.lt.s32.totalorder %s9, 3
    %p129 = pnand %p127, %p128
    %p130 = pneg %p129
    // Predicated region
    $region9: #{lit_dirnet_forward.10} parent=5 // pred_check
      _
    $region10: #{lit_dirnet_forward.10} parent=5 // pred_check_branch
      %132 = sbr.rel (%p129) target = $region12
    $region11: #{lit_dirnet_forward.10} parent=5 // pred_region
      %s133 = ssub.s32 %s9, 1
      // Predicated region
      $region13: #{lit_dirnet_forward.10} parent=11 // pred_check
        %p134 = pneg %p70
      $region14: #{lit_dirnet_forward.10} parent=11 // pred_check_branch
        %136 = sbr.rel (%p134) target = $region16
      $region15: #{lit_dirnet_forward.10} parent=11 // pred_region
        _
      $region16: #{lit_dirnet_forward.10} parent=11 // pred_fallthru
        _
      // Predicated region
      $region17: #{lit_dirnet_forward.10} parent=11 // pred_check
        %p137 = pneg %p91
      $region18: #{lit_dirnet_forward.10} parent=11 // pred_check_branch
        %139 = sbr.rel (%p137) target = $region20
      $region19: #{lit_dirnet_forward.10} parent=11 // pred_region
        _
      $region20: #{lit_dirnet_forward.10} parent=11 // pred_fallthru
        _
    $region12: #{lit_dirnet_forward.10} parent=5 // pred_fallthru
      _
    %p140 = scmp.lt.s32.totalorder %s9, 2
    // Predicated region
    $region21: #{lit_dirnet_forward.10} parent=5 // pred_check
      %p141 = pneg %p140
    $region22: #{lit_dirnet_forward.10} parent=5 // pred_check_branch
      %143 = sbr.rel (%p141) target = $region24
    $region23: #{lit_dirnet_forward.10} parent=5 // pred_region
      // Predicated region
      $region25: #{lit_dirnet_forward.10} parent=23 // pred_check
        %p144 = pneg %p43
      $region26: #{lit_dirnet_forward.10} parent=23 // pred_check_branch
        %146 = sbr.rel (%p144) target = $region28
      $region27: #{lit_dirnet_forward.10} parent=23 // pred_region
        %p147 = scmp.lt.s32.totalorder %s16, 1
        %s148 = scalar_select %p147, %s16, 1
        %p149 = scmp.lt.s32.totalorder %s17, 0
        %s150 = scalar_select %p149, %s17, 0
        %s151 = smul.addr %s148, 36
        %s152 = sadd.s32 %s150, %s151
        %s153 = smul.addr %s152, 4
        %s154 = scalar_lea.vmem %s0, %s153
      $region28: #{lit_dirnet_forward.10} parent=23 // pred_fallthru
        _
    $region24: #{lit_dirnet_forward.10} parent=5 // pred_fallthru
      _
    %p155 = scmp.le.s32.totalorder 1, %s9
    %p156 = scmp.lt.s32.totalorder %s9, 3
    %p157 = pnand %p155, %p156
    %p158 = pneg %p157
    // Predicated region
    $region29: #{lit_dirnet_forward.10} parent=5 // pred_check
      _
    $region30: #{lit_dirnet_forward.10} parent=5 // pred_check_branch
      %160 = sbr.rel (%p157) target = $region32
    $region31: #{lit_dirnet_forward.10} parent=5 // pred_region
      %s161 = ssub.s32 %s9, 1
      %p162 = scmp.lt.s32.totalorder %s18, 1
      %s163 = scalar_select %p162, %s18, 1
      %p164 = scmp.lt.s32.totalorder %s19, 0
      %s165 = scalar_select %p164, %s19, 0
      %s166 = smul.addr %s163, 36
      %s167 = sadd.s32 %s165, %s166
      %s168 = smul.addr %s167, 4
      %s169 = scalar_lea.vmem %s0, %s168
      %p170 = pneg %p49
      %p171 = pneg %p46
      %p172 = pneg %p70
      %p173 = pneg %p67
      %p174 = pneg %p91
      %p175 = pneg %p88
      %p176 = pneg %p119
      %p177 = pneg %p116
      %p178 = scmp.lt.s32.totalorder %s18, 1
      %s179 = scalar_select %p178, %s18, 1
      %p180 = scmp.lt.s32.totalorder %s19, 0
      %s181 = scalar_select %p180, %s19, 0
      %s182 = smul.addr %s179, 4
      %s183 = sadd.s32 %s181, %s182
      %s184 = smul.addr %s183, 4
      %s185 = scalar_lea.vmem %s3, %s184
      %p186 = scmp.lt.s32.totalorder %s18, 1
      %s187 = scalar_select %p186, %s18, 1
      %p188 = scmp.lt.s32.totalorder %s19, 0
      %s189 = scalar_select %p188, %s19, 0
      %s190 = smul.addr %s187, 36
      %s191 = sadd.s32 %s189, %s190
      %s192 = smul.addr %s191, 4
      %s193 = scalar_lea.vmem %s0, %s192
      %p194 = scmp.lt.s32.totalorder %s18, 1
      %s195 = scalar_select %p194, %s18, 1
      %p196 = scmp.lt.s32.totalorder %s19, 0
      %s197 = scalar_select %p196, %s19, 0
      %s198 = smul.addr %s195, 4
      %s199 = sadd.s32 %s197, %s198
      %s200 = smul.addr %s199, 4
      %s201 = scalar_lea.vmem %s3, %s200
      %v203 = vld [vmem:[%s1] sm:$0xff]
      %v204 = vld [vmem:[%s1 + $0x8] sm:$0xf]
      %v205 = vld [vmem:[%s1 + $0xc] sm:$0xff]
      %v206 = vld [vmem:[%s1 + $0x14] sm:$0xf]
      %v207 = vld [vmem:[%s1 + $0x18] sm:$0xff]
      %v208 = vld [vmem:[%s1 + $0x20] sm:$0xf]
      %v209 = vld [vmem:[%s1 + $0x24] sm:$0xff]
      %v210 = vld [vmem:[%s1 + $0x2c] sm:$0xf]
      %v211 = vld [vmem:[%s193] sm:$0xf]
      %v212 = vld [vmem:[%s193 + $0x4] sm:$0xf]
      %v213 = vld [vmem:[%s193 + $0x8] sm:$0xf]
      %v214 = vld [vmem:[%s193 + $0xc] sm:$0xf]
      %v215 = vld [vmem:[%s193 + $0x10] sm:$0xf]
      %v216 = vld [vmem:[%s193 + $0x14] sm:$0xf]
      %v217 = vld [vmem:[%s193 + $0x18] sm:$0xf]
      %v218 = vld [vmem:[%s193 + $0x1c] sm:$0xf]
      %v219 = vld [vmem:[%s193 + $0x20] sm:$0xf]
      %v220 = vld [vmem:[%s193 + $0x24] sm:$0xf]
      %v221 = vld [vmem:[%s193 + $0x28] sm:$0xf]
      %v222 = vld [vmem:[%s193 + $0x2c] sm:$0xf]
      %v223 = vld [vmem:[%s193 + $0x30] sm:$0xf]
      %v224 = vld [vmem:[%s193 + $0x34] sm:$0xf]
      %v225 = vld [vmem:[%s193 + $0x38] sm:$0xf]
      %v226 = vld [vmem:[%s193 + $0x3c] sm:$0xf]
      %v227 = vld [vmem:[%s193 + $0x40] sm:$0xf]
      %v228 = vld [vmem:[%s193 + $0x44] sm:$0xf]
      %v229 = vld [vmem:[%s193 + $0x48] sm:$0xf]
      %v230 = vld [vmem:[%s193 + $0x4c] sm:$0xf]
      %v231 = vld [vmem:[%s193 + $0x50] sm:$0xf]
      %v232 = vld [vmem:[%s193 + $0x54] sm:$0xf]
      %v233 = vld [vmem:[%s193 + $0x58] sm:$0xf]
      %v234 = vld [vmem:[%s193 + $0x5c] sm:$0xf]
      %v235 = vld [vmem:[%s193 + $0x60] sm:$0xf]
      %v236 = vld [vmem:[%s193 + $0x64] sm:$0xf]
      %v237 = vld [vmem:[%s193 + $0x68] sm:$0xf]
      %v238 = vld [vmem:[%s193 + $0x6c] sm:$0xf]
      %v239 = vld [vmem:[%s193 + $0x70] sm:$0xf]
      %v240 = vld [vmem:[%s193 + $0x74] sm:$0xf]
      %v241 = vld [vmem:[%s193 + $0x78] sm:$0xf]
      %v242 = vld [vmem:[%s193 + $0x7c] sm:$0xf]
      %v243 = vld [vmem:[%s193 + $0x80] sm:$0xf]
      %v244 = vld [vmem:[%s193 + $0x84] sm:$0xf]
      %v245 = vld [vmem:[%s193 + $0x88] sm:$0xf]
      %v246 = vld [vmem:[%s193 + $0x8c] sm:$0xf]
      %v247 = vld [vmem:[%s2] sm:$0xff]
      %v248 = vld [vmem:[%s2 + $0x8] sm:$0xff]
      %v249 = vld [vmem:[%s2 + $0x10] sm:$0xff]
      %v250 = vld [vmem:[%s2 + $0x18] sm:$0xff]
      %252 = vset.pattern.permute.xlu0 0
      %253 = vperm.xlu0 %252, %v247
      %v254 = vpop.permute.xlu0 %253
      %257 = vset.pattern.permute.xlu0 0
      %258 = vperm.xlu0 %257, %v248
      %v259 = vpop.permute.xlu0 %258
      %262 = vset.pattern.permute.xlu0 0
      %263 = vperm.xlu0 %262, %v249
      %v264 = vpop.permute.xlu0 %263
      %267 = vset.pattern.permute.xlu0 0
      %268 = vperm.xlu0 %267, %v250
      %v269 = vpop.permute.xlu0 %268
      %v279 = vunpack.c.l.b16 %v203
      %v280 = vunpack.c.h.b16 %v203
      %v281 = vunpack.c.l.b16 %v204
      %v282 = vunpack.c.l.b16 %v205
      %v283 = vunpack.c.h.b16 %v205
      %v284 = vunpack.c.l.b16 %v206
      %v285 = vunpack.c.l.b16 %v207
      %v286 = vunpack.c.h.b16 %v207
      %v287 = vunpack.c.l.b16 %v208
      %v288 = vunpack.c.l.b16 %v209
      %v289 = vunpack.c.h.b16 %v209
      %v290 = vunpack.c.l.b16 %v210
      %v291 = vpack.c.b16 %v282, %v279
      %v292 = vpack.c.b16 %v283, %v280
      %v293 = vpack.c.b16 %v284, %v281
      %v294 = vpack.c.b16 %v288, %v285
      %v295 = vpack.c.b16 %v289, %v286
      %v296 = vpack.c.b16 %v290, %v287
      %v337 = vunpack.c.l.b16 %v211
      %v338 = vunpack.c.l.b16 %v212
      %v339 = vunpack.c.l.b16 %v213
      %v340 = vunpack.c.l.b16 %v214
      %v341 = vunpack.c.l.b16 %v215
      %v342 = vunpack.c.l.b16 %v216
      %v343 = vunpack.c.l.b16 %v217
      %v344 = vunpack.c.l.b16 %v218
      %v345 = vunpack.c.l.b16 %v219
      %v346 = vunpack.c.l.b16 %v220
      %v347 = vunpack.c.l.b16 %v221
      %v348 = vunpack.c.l.b16 %v222
      %v349 = vunpack.c.l.b16 %v223
      %v350 = vunpack.c.l.b16 %v224
      %v351 = vunpack.c.l.b16 %v225
      %v352 = vunpack.c.l.b16 %v226
      %v353 = vunpack.c.l.b16 %v227
      %v354 = vunpack.c.l.b16 %v228
      %v355 = vunpack.c.l.b16 %v229
      %v356 = vunpack.c.l.b16 %v230
      %v357 = vunpack.c.l.b16 %v231
      %v358 = vunpack.c.l.b16 %v232
      %v359 = vunpack.c.l.b16 %v233
      %v360 = vunpack.c.l.b16 %v234
      %v361 = vunpack.c.l.b16 %v235
      %v362 = vunpack.c.l.b16 %v236
      %v363 = vunpack.c.l.b16 %v237
      %v364 = vunpack.c.l.b16 %v238
      %v365 = vunpack.c.l.b16 %v239
      %v366 = vunpack.c.l.b16 %v240
      %v367 = vunpack.c.l.b16 %v241
      %v368 = vunpack.c.l.b16 %v242
      %v369 = vunpack.c.l.b16 %v243
      %v370 = vunpack.c.l.b16 %v244
      %v371 = vunpack.c.l.b16 %v245
      %v372 = vunpack.c.l.b16 %v246
      %v373 = vpack.c.b16 %v338, %v337
      %v374 = vpack.c.b16 %v340, %v339
      %v375 = vpack.c.b16 %v342, %v341
      %v376 = vpack.c.b16 %v344, %v343
      %v377 = vpack.c.b16 %v346, %v345
      %v378 = vpack.c.b16 %v348, %v347
      %v379 = vpack.c.b16 %v350, %v349
      %v380 = vpack.c.b16 %v352, %v351
      %v381 = vpack.c.b16 %v354, %v353
      %v382 = vpack.c.b16 %v356, %v355
      %v383 = vpack.c.b16 %v358, %v357
      %v384 = vpack.c.b16 %v360, %v359
      %v385 = vpack.c.b16 %v362, %v361
      %v386 = vpack.c.b16 %v364, %v363
      %v387 = vpack.c.b16 %v366, %v365
      %v388 = vpack.c.b16 %v368, %v367
      %v389 = vpack.c.b16 %v370, %v369
      %v390 = vpack.c.b16 %v372, %v371
      %vm409 = vcmask 261120
      %v411 = vsel %vm409, %v293, 0
      %v414 = vsel %vm409, %v296, 0
      %416 = vmatpush.bf16.msra.mxu0 %v380
      %417 = vmatpush.bf16.msra.mxu0 %v379
      %418 = vmatpush.bf16.msra.mxu0 %v378
      %419 = vmatpush.bf16.msra.mxu0 %v377
      %420 = vmatpush.bf16.msra.mxu0 %v376
      %421 = vmatpush.bf16.msra.mxu0 %v375
      %422 = vmatpush.bf16.msra.mxu0 %v374
      %423 = vmatpush.bf16.msra.mxu0 %v373
      %424 = vmatmul.bf16.gmra.mxu0 %v291
      %v425 = vpop.f32.mrf.mxu0
      %v426 = vadd.f32 %v254, %v425
      %v427 = vpop.f32.mrf.mxu0
      %v428 = vadd.f32 %v259, %v427
      %429 = vmatmul.bf16.gmra.mxu0 %v294
      %v430 = vpop.f32.mrf.mxu0
      %v431 = vadd.f32 %v264, %v430
      %v432 = vpop.f32.mrf.mxu0
      %v433 = vadd.f32 %v269, %v432
      %434 = vdwg.mxu0
      %435 = vmatpush.bf16.msra.mxu0 %v388
      %436 = vmatpush.bf16.msra.mxu0 %v387
      %437 = vmatpush.bf16.msra.mxu0 %v386
      %438 = vmatpush.bf16.msra.mxu0 %v385
      %439 = vmatpush.bf16.msra.mxu0 %v384
      %440 = vmatpush.bf16.msra.mxu0 %v383
      %441 = vmatpush.bf16.msra.mxu0 %v382
      %442 = vmatpush.bf16.msra.mxu0 %v381
      %443 = vmatmul.bf16.gmra.mxu0 %v292
      %v444 = vpop.f32.mrf.mxu0
      %v445 = vadd.f32 %v426, %v444
      %v446 = vpop.f32.mrf.mxu0
      %v447 = vadd.f32 %v428, %v446
      %448 = vmatmul.bf16.gmra.mxu0 %v295
      %v449 = vpop.f32.mrf.mxu0
      %v450 = vadd.f32 %v431, %v449
      %v451 = vpop.f32.mrf.mxu0
      %v452 = vadd.f32 %v433, %v451
      %453 = vdwg.mxu0
      %454 = vmatpush.bf16.msra.mxu0 0
      %455 = vmatpush.bf16.msra.mxu0 0
      %456 = vmatpush.bf16.msra.mxu0 0
      %457 = vmatpush.bf16.msra.mxu0 0
      %458 = vmatpush.bf16.msra.mxu0 0
      %459 = vmatpush.bf16.msra.mxu0 0
      %460 = vmatpush.bf16.msra.mxu0 %v390
      %461 = vmatpush.bf16.msra.mxu0 %v389
      %462 = vmatmul.bf16.gmra.mxu0 %v411
      %v463 = vpop.f32.mrf.mxu0
      %v464 = vadd.f32 %v445, %v463
      %v465 = vpop.f32.mrf.mxu0
      %v466 = vadd.f32 %v447, %v465
      %467 = vmatmul.bf16.gmra.mxu0 %v414
      %v468 = vpop.f32.mrf.mxu0
      %v469 = vadd.f32 %v450, %v468
      %v470 = vpop.f32.mrf.mxu0
      %v471 = vadd.f32 %v452, %v470
      %472 = vdwg.mxu0
      %v473 = vmax.f32 %v464, 0.0
      %v474 = vmax.f32 %v466, 0.0
      %v475 = vmax.f32 %v469, 0.0
      %v476 = vmax.f32 %v471, 0.0
      %v477 = vpack.c.bf16 %v473, %v473
      %v478 = vpack.c.bf16 %v474, %v474
      %v479 = vpack.c.bf16 %v475, %v475
      %v480 = vpack.c.bf16 %v476, %v476
      %vm481 = vcmask 519168
      %482 = vst.msk [vmem:[%s201] sm:$0xf] %vm481, %v477
      %483 = vst.msk [vmem:[%s201 + $0x4] sm:$0xf] %vm481, %v478
      %484 = vst.msk [vmem:[%s201 + $0x8] sm:$0xf] %vm481, %v479
      %485 = vst.msk [vmem:[%s201 + $0xc] sm:$0xf] %vm481, %v480
      %p486 = scmp.lt.s32.totalorder %s18, 1
      %s487 = scalar_select %p486, %s18, 1
      %p488 = scmp.lt.s32.totalorder %s19, 0
      %s489 = scalar_select %p488, %s19, 0
      %s490 = smul.addr %s487, 4
      %s491 = sadd.s32 %s489, %s490
      %s492 = smul.addr %s491, 4
      %s493 = scalar_lea.vmem %s3, %s492
      // Predicated region
      $region33: #{lit_dirnet_forward.10} parent=31 // pred_check
        %p494 = pneg %p116
      $region34: #{lit_dirnet_forward.10} parent=31 // pred_check_branch
        %496 = sbr.rel (%p494) target = $region36
      $region35: #{lit_dirnet_forward.10} parent=31 // pred_region
        _
      $region36: #{lit_dirnet_forward.10} parent=31 // pred_fallthru
        _
    $region32: #{lit_dirnet_forward.10} parent=5 // pred_fallthru
      _
    %p497 = scmp.le.s32.totalorder 2, %s9
    // Predicated region
    $region37: #{lit_dirnet_forward.10} parent=5 // pred_check
      %p498 = pneg %p497
    $region38: #{lit_dirnet_forward.10} parent=5 // pred_check_branch
      %500 = sbr.rel (%p498) target = $region40
    $region39: #{lit_dirnet_forward.10} parent=5 // pred_region
      %s501 = ssub.s32 %s9, 2
      // Predicated region
      $region41: #{lit_dirnet_forward.10} parent=39 // pred_check
        %p502 = pneg %p122
      $region42: #{lit_dirnet_forward.10} parent=39 // pred_check_branch
        %504 = sbr.rel (%p502) target = $region44
      $region43: #{lit_dirnet_forward.10} parent=39 // pred_region
        %p505 = scmp.lt.s32.totalorder %s20, 1
        %s506 = scalar_select %p505, %s20, 1
        %p507 = scmp.lt.s32.totalorder %s21, 0
        %s508 = scalar_select %p507, %s21, 0
        %s509 = smul.addr %s506, 4
        %s510 = sadd.s32 %s508, %s509
        %s511 = smul.addr %s510, 4
        %s512 = scalar_lea.vmem %s3, %s511
      $region44: #{lit_dirnet_forward.10} parent=39 // pred_fallthru
        _
    $region40: #{lit_dirnet_forward.10} parent=5 // pred_fallthru
      _
  $region6: #{lit_dirnet_forward.10} parent=0 // loop_footer
    %s13 = sadd.s32 1, %s9
  $region7: #{lit_dirnet_forward.10} parent=0 // loop_footer_branch
    %8 = sbr.rel target = $region3
  $region8: #{lit_dirnet_forward.10} parent=0 // loop_exit
    _

// kernel: lit_dirnet_forward.14
$region0: #{lit_dirnet_forward.14}
  #allocation0 [shape = 'u32[]', space=smem, size = 0x4, offset = 0x4, fixed_abs, tag = 'smem constant byte address 0x4 - core index']
  #allocation1 [shape = 'u32[72,128]{1,0:T(1,128)}', space=vmem, size = 0x9000, scoped, tag = 'internal scratch']
  %s0 = inlined_call_operand.vmem [shape: bf16[2,32,64], index: 0, kind: input, shape index: {}]
  %s1 = inlined_call_operand.vmem [shape: bf16[32,32], index: 1, kind: input, shape index: {}]
  %s2 = inlined_call_operand.vmem [shape: f32[32,1], index: 2, kind: input, shape index: {}]
  %s3 = inlined_call_operand.vmem [shape: bf16[2,32,64], index: 3, kind: output, shape index: {}]
  %s4 = sld [smem:[#allocation0]]
  $region45: #{lit_dirnet_forward.14} parent=0
    _
  %s6 = ssub.s32 1, %s4
  %s7 = scalar_select 0, %s6, %s4
  loop: start=0, step=1, limit=4
  $region2: #{lit_dirnet_forward.14} parent=0 // loop_pre_header
    _
  $region3: #{lit_dirnet_forward.14} parent=0 // loop_header
    %s9 = sphi 0, %s13
    %p10 = scmp.ge.s32.totalorder %s9, 4
    %s16 = sphi 0, %s28
    %s17 = sphi 0, %s24
    %s18 = sphi 0, %s16
    %s19 = sphi 0, %s17
    %s20 = sphi 0, %s18
    %s21 = sphi 0, %s19
    %s33 = sphi 0, %s35
    %s36 = sphi 0, %s33
    %s37 = sphi 0, %s36
    %s53 = sphi 0, %s37
    %s57 = sphi 0, %s57
    %s59 = sphi 0, %s57
    %s60 = sphi 0, %s59
    %s74 = sphi 0, %s60
    %s78 = sphi 0, %s78
    %s80 = sphi 0, %s78
    %s81 = sphi 0, %s80
    %s95 = sphi 0, %s81
    %s103 = sphi 0, %s105
    %s106 = sphi 0, %s103
    %s107 = sphi 0, %s106
    %s123 = sphi 0, %s107
  $region4: #{lit_dirnet_forward.14} parent=0 // loop_header_branch
    %12 = sbr.rel (%p10) target = $region8
  $region5: #{lit_dirnet_forward.14} parent=0 // loop_body
    %s14 = ssub.s32 %s9, 1
    %s15 = ssub.s32 %s9, 2
    %s22 = sadd.s32 1, %s17
    %p23 = scmp.ge.s32.totalorder %s22, 1
    %s24 = scalar_select %p23, 0, %s22
    %s25 = sadd.s32 1, %s16
    %s26 = scalar_select %p23, %s25, %s16
    %p27 = scmp.ge.s32.totalorder %s26, 2
    %s28 = scalar_select %p27, 0, %s26
    %s29 = ssub.s32 %s16, %s28
    %s30 = ssub.s32 %s17, %s24
    %s31 = sor.u32 %s29, %s30
    %p32 = scmp.eq.s32.totalorder %s31, 0
    %s34 = sadd.s32 %s33, 1
    %s35 = scalar_select %p32, %s33, %s34
    %p38 = pneg %p32
    %p39 = scmp.eq.s32.totalorder %s9, 1
    %p40 = por %p38, %p39
    %p41 = scmp.ne.s32.totalorder %s33, %s36
    %p42 = scmp.eq.s32.totalorder %s9, 0
    %p43 = por %p41, %p42
    %p44 = scmp.ne.s32.totalorder %s33, %s36
    %p45 = scmp.eq.s32.totalorder %s14, 1
    %p46 = por %p44, %p45
    %p47 = scmp.ne.s32.totalorder %s36, %s37
    %p48 = scmp.eq.s32.totalorder %s14, 0
    %p49 = por %p47, %p48
    %p50 = scmp.ne.s32.totalorder %s36, %s37
    %p51 = scmp.eq.s32.totalorder %s15, 1
    %p52 = por %p50, %p51
    %p54 = scmp.ne.s32.totalorder %s37, %s53
    %p55 = scmp.eq.s32.totalorder %s15, 0
    %p56 = por %p54, %p55
    %s58 = sadd.s32 %s57, 1
    %p61 = scmp.eq.s32.totalorder %s9, 1
    %p62 = scmp.ne.s32.totalorder %s57, %s59
    %p63 = scmp.eq.s32.totalorder %s9, 0
    %p64 = por %p62, %p63
    %p65 = scmp.ne.s32.totalorder %s57, %s59
    %p66 = scmp.eq.s32.totalorder %s14, 1
    %p67 = por %p65, %p66
    %p68 = scmp.ne.s32.totalorder %s59, %s60
    %p69 = scmp.eq.s32.totalorder %s14, 0
    %p70 = por %p68, %p69
    %p71 = scmp.ne.s32.totalorder %s59, %s60
    %p72 = scmp.eq.s32.totalorder %s15, 1
    %p73 = por %p71, %p72
    %p75 = scmp.ne.s32.totalorder %s60, %s74
    %p76 = scmp.eq.s32.totalorder %s15, 0
    %p77 = por %p75, %p76
    %s79 = sadd.s32 %s78, 1
    %p82 = scmp.eq.s32.totalorder %s9, 1
    %p83 = scmp.ne.s32.totalorder %s78, %s80
    %p84 = scmp.eq.s32.totalorder %s9, 0
    %p85 = por %p83, %p84
    %p86 = scmp.ne.s32.totalorder %s78, %s80
    %p87 = scmp.eq.s32.totalorder %s14, 1
    %p88 = por %p86, %p87
    %p89 = scmp.ne.s32.totalorder %s80, %s81
    %p90 = scmp.eq.s32.totalorder %s14, 0
    %p91 = por %p89, %p90
    %p92 = scmp.ne.s32.totalorder %s80, %s81
    %p93 = scmp.eq.s32.totalorder %s15, 1
    %p94 = por %p92, %p93
    %p96 = scmp.ne.s32.totalorder %s81, %s95
    %p97 = scmp.eq.s32.totalorder %s15, 0
    %p98 = por %p96, %p97
    %s99 = ssub.s32 %s16, %s28
    %s100 = ssub.s32 %s17, %s24
    %s101 = sor.u32 %s99, %s100
    %p102 = scmp.eq.s32.totalorder %s101, 0
    %s104 = sadd.s32 %s103, 1
    %s105 = scalar_select %p102, %s103, %s104
    %p108 = pneg %p102
    %p109 = scmp.eq.s32.totalorder %s9, 1
    %p110 = por %p108, %p109
    %p111 = scmp.ne.s32.totalorder %s103, %s106
    %p112 = scmp.eq.s32.totalorder %s9, 0
    %p113 = por %p111, %p112
    %p114 = scmp.ne.s32.totalorder %s103, %s106
    %p115 = scmp.eq.s32.totalorder %s14, 1
    %p116 = por %p114, %p115
    %p117 = scmp.ne.s32.totalorder %s106, %s107
    %p118 = scmp.eq.s32.totalorder %s14, 0
    %p119 = por %p117, %p118
    %p120 = scmp.ne.s32.totalorder %s106, %s107
    %p121 = scmp.eq.s32.totalorder %s15, 1
    %p122 = por %p120, %p121
    %p124 = scmp.ne.s32.totalorder %s107, %s123
    %p125 = scmp.eq.s32.totalorder %s15, 0
    %p126 = por %p124, %p125
    %p127 = scmp.le.s32.totalorder 1, %s9
    %p128 = scmp.lt.s32.totalorder %s9, 3
    %p129 = pnand %p127, %p128
    %p130 = pneg %p129
    // Predicated region
    $region9: #{lit_dirnet_forward.14} parent=5 // pred_check
      _
    $region10: #{lit_dirnet_forward.14} parent=5 // pred_check_branch
      %132 = sbr.rel (%p129) target = $region12
    $region11: #{lit_dirnet_forward.14} parent=5 // pred_region
      %s133 = ssub.s32 %s9, 1
      // Predicated region
      $region13: #{lit_dirnet_forward.14} parent=11 // pred_check
        %p134 = pneg %p70
      $region14: #{lit_dirnet_forward.14} parent=11 // pred_check_branch
        %136 = sbr.rel (%p134) target = $region16
      $region15: #{lit_dirnet_forward.14} parent=11 // pred_region
        _
      $region16: #{lit_dirnet_forward.14} parent=11 // pred_fallthru
        _
      // Predicated region
      $region17: #{lit_dirnet_forward.14} parent=11 // pred_check
        %p137 = pneg %p91
      $region18: #{lit_dirnet_forward.14} parent=11 // pred_check_branch
        %139 = sbr.rel (%p137) target = $region20
      $region19: #{lit_dirnet_forward.14} parent=11 // pred_region
        _
      $region20: #{lit_dirnet_forward.14} parent=11 // pred_fallthru
        _
    $region12: #{lit_dirnet_forward.14} parent=5 // pred_fallthru
      _
    %p140 = scmp.lt.s32.totalorder %s9, 2
    // Predicated region
    $region21: #{lit_dirnet_forward.14} parent=5 // pred_check
      %p141 = pneg %p140
    $region22: #{lit_dirnet_forward.14} parent=5 // pred_check_branch
      %143 = sbr.rel (%p141) target = $region24
    $region23: #{lit_dirnet_forward.14} parent=5 // pred_region
      // Predicated region
      $region25: #{lit_dirnet_forward.14} parent=23 // pred_check
        %p144 = pneg %p43
      $region26: #{lit_dirnet_forward.14} parent=23 // pred_check_branch
        %146 = sbr.rel (%p144) target = $region28
      $region27: #{lit_dirnet_forward.14} parent=23 // pred_region
        %p147 = scmp.lt.s32.totalorder %s16, 1
        %s148 = scalar_select %p147, %s16, 1
        %p149 = scmp.lt.s32.totalorder %s17, 0
        %s150 = scalar_select %p149, %s17, 0
        %s151 = smul.addr %s148, 4
        %s152 = sadd.s32 %s150, %s151
        %s153 = smul.addr %s152, 4
        %s154 = scalar_lea.vmem %s0, %s153
      $region28: #{lit_dirnet_forward.14} parent=23 // pred_fallthru
        _
    $region24: #{lit_dirnet_forward.14} parent=5 // pred_fallthru
      _
    %p155 = scmp.le.s32.totalorder 1, %s9
    %p156 = scmp.lt.s32.totalorder %s9, 3
    %p157 = pnand %p155, %p156
    %p158 = pneg %p157
    // Predicated region
    $region29: #{lit_dirnet_forward.14} parent=5 // pred_check
      _
    $region30: #{lit_dirnet_forward.14} parent=5 // pred_check_branch
      %160 = sbr.rel (%p157) target = $region32
    $region31: #{lit_dirnet_forward.14} parent=5 // pred_region
      %s161 = ssub.s32 %s9, 1
      %p162 = scmp.lt.s32.totalorder %s18, 1
      %s163 = scalar_select %p162, %s18, 1
      %p164 = scmp.lt.s32.totalorder %s19, 0
      %s165 = scalar_select %p164, %s19, 0
      %s166 = smul.addr %s163, 4
      %s167 = sadd.s32 %s165, %s166
      %s168 = smul.addr %s167, 4
      %s169 = scalar_lea.vmem %s0, %s168
      %p170 = pneg %p49
      %p171 = pneg %p46
      %p172 = pneg %p70
      %p173 = pneg %p67
      %p174 = pneg %p91
      %p175 = pneg %p88
      %p176 = pneg %p119
      %p177 = pneg %p116
      %p178 = scmp.lt.s32.totalorder %s18, 1
      %s179 = scalar_select %p178, %s18, 1
      %p180 = scmp.lt.s32.totalorder %s19, 0
      %s181 = scalar_select %p180, %s19, 0
      %s182 = smul.addr %s179, 4
      %s183 = sadd.s32 %s181, %s182
      %s184 = smul.addr %s183, 4
      %s185 = scalar_lea.vmem %s3, %s184
      %p186 = scmp.lt.s32.totalorder %s18, 1
      %s187 = scalar_select %p186, %s18, 1
      %p188 = scmp.lt.s32.totalorder %s19, 0
      %s189 = scalar_select %p188, %s19, 0
      %s190 = smul.addr %s187, 4
      %s191 = sadd.s32 %s189, %s190
      %s192 = smul.addr %s191, 4
      %s193 = scalar_lea.vmem %s0, %s192
      %p194 = scmp.lt.s32.totalorder %s18, 1
      %s195 = scalar_select %p194, %s18, 1
      %p196 = scmp.lt.s32.totalorder %s19, 0
      %s197 = scalar_select %p196, %s19, 0
      %s198 = smul.addr %s195, 4
      %s199 = sadd.s32 %s197, %s198
      %s200 = smul.addr %s199, 4
      %s201 = scalar_lea.vmem %s3, %s200
      %v203 = vld [vmem:[%s1] sm:$0xf]
      %v204 = vld [vmem:[%s1 + $0x4] sm:$0xf]
      %v205 = vld [vmem:[%s1 + $0x8] sm:$0xf]
      %v206 = vld [vmem:[%s1 + $0xc] sm:$0xf]
      %v207 = vld [vmem:[%s193] sm:$0xf]
      %v208 = vld [vmem:[%s193 + $0x4] sm:$0xf]
      %v209 = vld [vmem:[%s193 + $0x8] sm:$0xf]
      %v210 = vld [vmem:[%s193 + $0xc] sm:$0xf]
      %v211 = vld [vmem:[%s2] sm:$0xff]
      %v212 = vld [vmem:[%s2 + $0x8] sm:$0xff]
      %v213 = vld [vmem:[%s2 + $0x10] sm:$0xff]
      %v214 = vld [vmem:[%s2 + $0x18] sm:$0xff]
      %216 = vset.pattern.permute.xlu0 0
      %217 = vperm.xlu0 %216, %v211
      %v218 = vpop.permute.xlu0 %217
      %221 = vset.pattern.permute.xlu0 0
      %222 = vperm.xlu0 %221, %v212
      %v223 = vpop.permute.xlu0 %222
      %226 = vset.pattern.permute.xlu0 0
      %227 = vperm.xlu0 %226, %v213
      %v228 = vpop.permute.xlu0 %227
      %231 = vset.pattern.permute.xlu0 0
      %232 = vperm.xlu0 %231, %v214
      %v233 = vpop.permute.xlu0 %232
      %v239 = vunpack.c.l.b16 %v203
      %v240 = vunpack.c.l.b16 %v204
      %v241 = vunpack.c.l.b16 %v205
      %v242 = vunpack.c.l.b16 %v206
      %v243 = vpack.c.b16 %v240, %v239
      %v244 = vpack.c.b16 %v242, %v241
      %v249 = vunpack.c.l.b16 %v207
      %v250 = vunpack.c.l.b16 %v208
      %v251 = vunpack.c.l.b16 %v209
      %v252 = vunpack.c.l.b16 %v210
      %v253 = vpack.c.b16 %v250, %v249
      %v254 = vpack.c.b16 %v252, %v251
      %vm257 = vcmask 261120
      %v259 = vsel %vm257, %v243, 0
      %v262 = vsel %vm257, %v244, 0
      %264 = vmatpush.bf16.msra.mxu0 0
      %265 = vmatpush.bf16.msra.mxu0 0
      %266 = vmatpush.bf16.msra.mxu0 0
      %267 = vmatpush.bf16.msra.mxu0 0
      %268 = vmatpush.bf16.msra.mxu0 0
      %269 = vmatpush.bf16.msra.mxu0 0
      %270 = vmatpush.bf16.msra.mxu0 %v254
      %271 = vmatpush.bf16.msra.mxu0 %v253
      %272 = vmatmul.bf16.gmra.mxu0 %v259
      %v273 = vpop.f32.mrf.mxu0
      %v274 = vadd.f32 %v218, %v273
      %v275 = vpop.f32.mrf.mxu0
      %v276 = vadd.f32 %v223, %v275
      %277 = vmatmul.bf16.gmra.mxu0 %v262
      %v278 = vpop.f32.mrf.mxu0
      %v279 = vadd.f32 %v228, %v278
      %v280 = vpop.f32.mrf.mxu0
      %v281 = vadd.f32 %v233, %v280
      %282 = vdwg.mxu0
      %v283 = vmax.f32 %v274, 0.0
      %v284 = vmax.f32 %v276, 0.0
      %v285 = vmax.f32 %v279, 0.0
      %v286 = vmax.f32 %v281, 0.0
      %v287 = vpack.c.bf16 %v283, %v283
      %v288 = vpack.c.bf16 %v284, %v284
      %v289 = vpack.c.bf16 %v285, %v285
      %v290 = vpack.c.bf16 %v286, %v286
      %vm291 = vcmask 519168
      %292 = vst.msk [vmem:[%s201] sm:$0xf] %vm291, %v287
      %293 = vst.msk [vmem:[%s201 + $0x4] sm:$0xf] %vm291, %v288
      %294 = vst.msk [vmem:[%s201 + $0x8] sm:$0xf] %vm291, %v289
      %295 = vst.msk [vmem:[%s201 + $0xc] sm:$0xf] %vm291, %v290
      %p296 = scmp.lt.s32.totalorder %s18, 1
      %s297 = scalar_select %p296, %s18, 1
      %p298 = scmp.lt.s32.totalorder %s19, 0
      %s299 = scalar_select %p298, %s19, 0
      %s300 = smul.addr %s297, 4
      %s301 = sadd.s32 %s299, %s300
      %s302 = smul.addr %s301, 4
      %s303 = scalar_lea.vmem %s3, %s302
      // Predicated region
      $region33: #{lit_dirnet_forward.14} parent=31 // pred_check
        %p304 = pneg %p116
      $region34: #{lit_dirnet_forward.14} parent=31 // pred_check_branch
        %306 = sbr.rel (%p304) target = $region36
      $region35: #{lit_dirnet_forward.14} parent=31 // pred_region
        _
      $region36: #{lit_dirnet_forward.14} parent=31 // pred_fallthru
        _
    $region32: #{lit_dirnet_forward.14} parent=5 // pred_fallthru
      _
    %p307 = scmp.le.s32.totalorder 2, %s9
    // Predicated region
    $region37: #{lit_dirnet_forward.14} parent=5 // pred_check
      %p308 = pneg %p307
    $region38: #{lit_dirnet_forward.14} parent=5 // pred_check_branch
      %310 = sbr.rel (%p308) target = $region40
    $region39: #{lit_dirnet_forward.14} parent=5 // pred_region
      %s311 = ssub.s32 %s9, 2
      // Predicated region
      $region41: #{lit_dirnet_forward.14} parent=39 // pred_check
        %p312 = pneg %p122
      $region42: #{lit_dirnet_forward.14} parent=39 // pred_check_branch
        %314 = sbr.rel (%p312) target = $region44
      $region43: #{lit_dirnet_forward.14} parent=39 // pred_region
        %p315 = scmp.lt.s32.totalorder %s20, 1
        %s316 = scalar_select %p315, %s20, 1
        %p317 = scmp.lt.s32.totalorder %s21, 0
        %s318 = scalar_select %p317, %s21, 0
        %s319 = smul.addr %s316, 4
        %s320 = sadd.s32 %s318, %s319
        %s321 = smul.addr %s320, 4
        %s322 = scalar_lea.vmem %s3, %s321
      $region44: #{lit_dirnet_forward.14} parent=39 // pred_fallthru
        _
    $region40: #{lit_dirnet_forward.14} parent=5 // pred_fallthru
      _
  $region6: #{lit_dirnet_forward.14} parent=0 // loop_footer
    %s13 = sadd.s32 1, %s9
  $region7: #{lit_dirnet_forward.14} parent=0 // loop_footer_branch
    %8 = sbr.rel target = $region3
  $region8: #{lit_dirnet_forward.14} parent=0 // loop_exit
    _

// kernel: lit_dirnet_forward.15
$region0: #{lit_dirnet_forward.15}
  #allocation0 [shape = 'u32[]', space=smem, size = 0x4, offset = 0x4, fixed_abs, tag = 'smem constant byte address 0x4 - core index']
  #allocation1 [shape = 'u32[72,128]{1,0:T(1,128)}', space=vmem, size = 0x9000, scoped, tag = 'internal scratch']
  %s0 = inlined_call_operand.vmem [shape: bf16[2,32,64], index: 0, kind: input, shape index: {}]
  %s1 = inlined_call_operand.vmem [shape: bf16[2,32], index: 1, kind: input, shape index: {}]
  %s2 = inlined_call_operand.vmem [shape: f32[2,1], index: 2, kind: input, shape index: {}]
  %s3 = inlined_call_operand.vmem [shape: f32[2,2,64], index: 3, kind: output, shape index: {}]
  %s4 = sld [smem:[#allocation0]]
  $region45: #{lit_dirnet_forward.15} parent=0
    _
  %s6 = ssub.s32 1, %s4
  %s7 = scalar_select 0, %s6, %s4
  loop: start=0, step=1, limit=4
  $region2: #{lit_dirnet_forward.15} parent=0 // loop_pre_header
    _
  $region3: #{lit_dirnet_forward.15} parent=0 // loop_header
    %s9 = sphi 0, %s13
    %p10 = scmp.ge.s32.totalorder %s9, 4
    %s16 = sphi 0, %s28
    %s17 = sphi 0, %s24
    %s18 = sphi 0, %s16
    %s19 = sphi 0, %s17
    %s20 = sphi 0, %s18
    %s21 = sphi 0, %s19
    %s33 = sphi 0, %s35
    %s36 = sphi 0, %s33
    %s37 = sphi 0, %s36
    %s53 = sphi 0, %s37
    %s57 = sphi 0, %s57
    %s59 = sphi 0, %s57
    %s60 = sphi 0, %s59
    %s74 = sphi 0, %s60
    %s78 = sphi 0, %s78
    %s80 = sphi 0, %s78
    %s81 = sphi 0, %s80
    %s95 = sphi 0, %s81
    %s103 = sphi 0, %s105
    %s106 = sphi 0, %s103
    %s107 = sphi 0, %s106
    %s123 = sphi 0, %s107
  $region4: #{lit_dirnet_forward.15} parent=0 // loop_header_branch
    %12 = sbr.rel (%p10) target = $region8
  $region5: #{lit_dirnet_forward.15} parent=0 // loop_body
    %s14 = ssub.s32 %s9, 1
    %s15 = ssub.s32 %s9, 2
    %s22 = sadd.s32 1, %s17
    %p23 = scmp.ge.s32.totalorder %s22, 1
    %s24 = scalar_select %p23, 0, %s22
    %s25 = sadd.s32 1, %s16
    %s26 = scalar_select %p23, %s25, %s16
    %p27 = scmp.ge.s32.totalorder %s26, 2
    %s28 = scalar_select %p27, 0, %s26
    %s29 = ssub.s32 %s16, %s28
    %s30 = ssub.s32 %s17, %s24
    %s31 = sor.u32 %s29, %s30
    %p32 = scmp.eq.s32.totalorder %s31, 0
    %s34 = sadd.s32 %s33, 1
    %s35 = scalar_select %p32, %s33, %s34
    %p38 = pneg %p32
    %p39 = scmp.eq.s32.totalorder %s9, 1
    %p40 = por %p38, %p39
    %p41 = scmp.ne.s32.totalorder %s33, %s36
    %p42 = scmp.eq.s32.totalorder %s9, 0
    %p43 = por %p41, %p42
    %p44 = scmp.ne.s32.totalorder %s33, %s36
    %p45 = scmp.eq.s32.totalorder %s14, 1
    %p46 = por %p44, %p45
    %p47 = scmp.ne.s32.totalorder %s36, %s37
    %p48 = scmp.eq.s32.totalorder %s14, 0
    %p49 = por %p47, %p48
    %p50 = scmp.ne.s32.totalorder %s36, %s37
    %p51 = scmp.eq.s32.totalorder %s15, 1
    %p52 = por %p50, %p51
    %p54 = scmp.ne.s32.totalorder %s37, %s53
    %p55 = scmp.eq.s32.totalorder %s15, 0
    %p56 = por %p54, %p55
    %s58 = sadd.s32 %s57, 1
    %p61 = scmp.eq.s32.totalorder %s9, 1
    %p62 = scmp.ne.s32.totalorder %s57, %s59
    %p63 = scmp.eq.s32.totalorder %s9, 0
    %p64 = por %p62, %p63
    %p65 = scmp.ne.s32.totalorder %s57, %s59
    %p66 = scmp.eq.s32.totalorder %s14, 1
    %p67 = por %p65, %p66
    %p68 = scmp.ne.s32.totalorder %s59, %s60
    %p69 = scmp.eq.s32.totalorder %s14, 0
    %p70 = por %p68, %p69
    %p71 = scmp.ne.s32.totalorder %s59, %s60
    %p72 = scmp.eq.s32.totalorder %s15, 1
    %p73 = por %p71, %p72
    %p75 = scmp.ne.s32.totalorder %s60, %s74
    %p76 = scmp.eq.s32.totalorder %s15, 0
    %p77 = por %p75, %p76
    %s79 = sadd.s32 %s78, 1
    %p82 = scmp.eq.s32.totalorder %s9, 1
    %p83 = scmp.ne.s32.totalorder %s78, %s80
    %p84 = scmp.eq.s32.totalorder %s9, 0
    %p85 = por %p83, %p84
    %p86 = scmp.ne.s32.totalorder %s78, %s80
    %p87 = scmp.eq.s32.totalorder %s14, 1
    %p88 = por %p86, %p87
    %p89 = scmp.ne.s32.totalorder %s80, %s81
    %p90 = scmp.eq.s32.totalorder %s14, 0
    %p91 = por %p89, %p90
    %p92 = scmp.ne.s32.totalorder %s80, %s81
    %p93 = scmp.eq.s32.totalorder %s15, 1
    %p94 = por %p92, %p93
    %p96 = scmp.ne.s32.totalorder %s81, %s95
    %p97 = scmp.eq.s32.totalorder %s15, 0
    %p98 = por %p96, %p97
    %s99 = ssub.s32 %s16, %s28
    %s100 = ssub.s32 %s17, %s24
    %s101 = sor.u32 %s99, %s100
    %p102 = scmp.eq.s32.totalorder %s101, 0
    %s104 = sadd.s32 %s103, 1
    %s105 = scalar_select %p102, %s103, %s104
    %p108 = pneg %p102
    %p109 = scmp.eq.s32.totalorder %s9, 1
    %p110 = por %p108, %p109
    %p111 = scmp.ne.s32.totalorder %s103, %s106
    %p112 = scmp.eq.s32.totalorder %s9, 0
    %p113 = por %p111, %p112
    %p114 = scmp.ne.s32.totalorder %s103, %s106
    %p115 = scmp.eq.s32.totalorder %s14, 1
    %p116 = por %p114, %p115
    %p117 = scmp.ne.s32.totalorder %s106, %s107
    %p118 = scmp.eq.s32.totalorder %s14, 0
    %p119 = por %p117, %p118
    %p120 = scmp.ne.s32.totalorder %s106, %s107
    %p121 = scmp.eq.s32.totalorder %s15, 1
    %p122 = por %p120, %p121
    %p124 = scmp.ne.s32.totalorder %s107, %s123
    %p125 = scmp.eq.s32.totalorder %s15, 0
    %p126 = por %p124, %p125
    %p127 = scmp.le.s32.totalorder 1, %s9
    %p128 = scmp.lt.s32.totalorder %s9, 3
    %p129 = pnand %p127, %p128
    %p130 = pneg %p129
    // Predicated region
    $region9: #{lit_dirnet_forward.15} parent=5 // pred_check
      _
    $region10: #{lit_dirnet_forward.15} parent=5 // pred_check_branch
      %132 = sbr.rel (%p129) target = $region12
    $region11: #{lit_dirnet_forward.15} parent=5 // pred_region
      %s133 = ssub.s32 %s9, 1
      // Predicated region
      $region13: #{lit_dirnet_forward.15} parent=11 // pred_check
        %p134 = pneg %p70
      $region14: #{lit_dirnet_forward.15} parent=11 // pred_check_branch
        %136 = sbr.rel (%p134) target = $region16
      $region15: #{lit_dirnet_forward.15} parent=11 // pred_region
        _
      $region16: #{lit_dirnet_forward.15} parent=11 // pred_fallthru
        _
      // Predicated region
      $region17: #{lit_dirnet_forward.15} parent=11 // pred_check
        %p137 = pneg %p91
      $region18: #{lit_dirnet_forward.15} parent=11 // pred_check_branch
        %139 = sbr.rel (%p137) target = $region20
      $region19: #{lit_dirnet_forward.15} parent=11 // pred_region
        _
      $region20: #{lit_dirnet_forward.15} parent=11 // pred_fallthru
        _
    $region12: #{lit_dirnet_forward.15} parent=5 // pred_fallthru
      _
    %p140 = scmp.lt.s32.totalorder %s9, 2
    // Predicated region
    $region21: #{lit_dirnet_forward.15} parent=5 // pred_check
      %p141 = pneg %p140
    $region22: #{lit_dirnet_forward.15} parent=5 // pred_check_branch
      %143 = sbr.rel (%p141) target = $region24
    $region23: #{lit_dirnet_forward.15} parent=5 // pred_region
      // Predicated region
      $region25: #{lit_dirnet_forward.15} parent=23 // pred_check
        %p144 = pneg %p43
      $region26: #{lit_dirnet_forward.15} parent=23 // pred_check_branch
        %146 = sbr.rel (%p144) target = $region28
      $region27: #{lit_dirnet_forward.15} parent=23 // pred_region
        %p147 = scmp.lt.s32.totalorder %s16, 1
        %s148 = scalar_select %p147, %s16, 1
        %p149 = scmp.lt.s32.totalorder %s17, 0
        %s150 = scalar_select %p149, %s17, 0
        %s151 = smul.addr %s148, 4
        %s152 = sadd.s32 %s150, %s151
        %s153 = smul.addr %s152, 4
        %s154 = scalar_lea.vmem %s0, %s153
      $region28: #{lit_dirnet_forward.15} parent=23 // pred_fallthru
        _
    $region24: #{lit_dirnet_forward.15} parent=5 // pred_fallthru
      _
    %p155 = scmp.le.s32.totalorder 1, %s9
    %p156 = scmp.lt.s32.totalorder %s9, 3
    %p157 = pnand %p155, %p156
    %p158 = pneg %p157
    // Predicated region
    $region29: #{lit_dirnet_forward.15} parent=5 // pred_check
      _
    $region30: #{lit_dirnet_forward.15} parent=5 // pred_check_branch
      %160 = sbr.rel (%p157) target = $region32
    $region31: #{lit_dirnet_forward.15} parent=5 // pred_region
      %s161 = ssub.s32 %s9, 1
      %p162 = scmp.lt.s32.totalorder %s18, 1
      %s163 = scalar_select %p162, %s18, 1
      %p164 = scmp.lt.s32.totalorder %s19, 0
      %s165 = scalar_select %p164, %s19, 0
      %s166 = smul.addr %s163, 4
      %s167 = sadd.s32 %s165, %s166
      %s168 = smul.addr %s167, 4
      %s169 = scalar_lea.vmem %s0, %s168
      %p170 = pneg %p49
      %p171 = pneg %p46
      %p172 = pneg %p70
      %p173 = pneg %p67
      %p174 = pneg %p91
      %p175 = pneg %p88
      %p176 = pneg %p119
      %p177 = pneg %p116
      %p178 = scmp.lt.s32.totalorder %s18, 1
      %s179 = scalar_select %p178, %s18, 1
      %p180 = scmp.lt.s32.totalorder %s19, 0
      %s181 = scalar_select %p180, %s19, 0
      %s182 = sadd.s32 %s181, %s179
      %s183 = smul.addr %s182, 2
      %s184 = scalar_lea.vmem %s3, %s183
      %p185 = scmp.lt.s32.totalorder %s18, 1
      %s186 = scalar_select %p185, %s18, 1
      %p187 = scmp.lt.s32.totalorder %s19, 0
      %s188 = scalar_select %p187, %s19, 0
      %s189 = smul.addr %s186, 4
      %s190 = sadd.s32 %s188, %s189
      %s191 = smul.addr %s190, 4
      %s192 = scalar_lea.vmem %s0, %s191
      %p193 = scmp.lt.s32.totalorder %s18, 1
      %s194 = scalar_select %p193, %s18, 1
      %p195 = scmp.lt.s32.totalorder %s19, 0
      %s196 = scalar_select %p195, %s19, 0
      %s197 = sadd.s32 %s196, %s194
      %s198 = smul.addr %s197, 2
      %s199 = scalar_lea.vmem %s3, %s198
      %v201 = vld [vmem:[%s1] sm:$0x1]
      %v202 = vld [vmem:[%s192] sm:$0xf]
      %v203 = vld [vmem:[%s192 + $0x4] sm:$0xf]
      %v204 = vld [vmem:[%s192 + $0x8] sm:$0xf]
      %v205 = vld [vmem:[%s192 + $0xc] sm:$0xf]
      %v206 = vld [vmem:[%s2] sm:$0x3]
      %208 = vset.pattern.permute.xlu0 0
      %209 = vperm.xlu0 %208, %v206
      %v210 = vpop.permute.xlu0 %209
      %v216 = vunpack.c.l.b16 %v202
      %v217 = vunpack.c.l.b16 %v203
      %v218 = vunpack.c.l.b16 %v204
      %v219 = vunpack.c.l.b16 %v205
      %v220 = vpack.c.b16 %v217, %v216
      %v221 = vpack.c.b16 %v219, %v218
      %vm224 = vcmask 261120
      %v226 = vsel %vm224, %v201, 0
      %228 = vmatpush.bf16.msra.mxu0 0
      %229 = vmatpush.bf16.msra.mxu0 0
      %230 = vmatpush.bf16.msra.mxu0 0
      %231 = vmatpush.bf16.msra.mxu0 0
      %232 = vmatpush.bf16.msra.mxu0 0
      %233 = vmatpush.bf16.msra.mxu0 0
      %234 = vmatpush.bf16.msra.mxu0 %v221
      %235 = vmatpush.bf16.msra.mxu0 %v220
      %236 = vmatmul.bf16.gmra.mxu0 %v226
      %v237 = vpop.f32.mrf.mxu0
      %v238 = vadd.f32 %v210, %v237
      %v239 = vpop.f32.mrf.mxu0
      %240 = vdwg.mxu0
      %vm241 = vcmask 517120
      %242 = vst.msk [vmem:[%s199] sm:$0x3] %vm241, %v238
      %p243 = scmp.lt.s32.totalorder %s18, 1
      %s244 = scalar_select %p243, %s18, 1
      %p245 = scmp.lt.s32.totalorder %s19, 0
      %s246 = scalar_select %p245, %s19, 0
      %s247 = sadd.s32 %s246, %s244
      %s248 = smul.addr %s247, 2
      %s249 = scalar_lea.vmem %s3, %s248
      // Predicated region
      $region33: #{lit_dirnet_forward.15} parent=31 // pred_check
        %p250 = pneg %p116
      $region34: #{lit_dirnet_forward.15} parent=31 // pred_check_branch
        %252 = sbr.rel (%p250) target = $region36
      $region35: #{lit_dirnet_forward.15} parent=31 // pred_region
        _
      $region36: #{lit_dirnet_forward.15} parent=31 // pred_fallthru
        _
    $region32: #{lit_dirnet_forward.15} parent=5 // pred_fallthru
      _
    %p253 = scmp.le.s32.totalorder 2, %s9
    // Predicated region
    $region37: #{lit_dirnet_forward.15} parent=5 // pred_check
      %p254 = pneg %p253
    $region38: #{lit_dirnet_forward.15} parent=5 // pred_check_branch
      %256 = sbr.rel (%p254) target = $region40
    $region39: #{lit_dirnet_forward.15} parent=5 // pred_region
      %s257 = ssub.s32 %s9, 2
      // Predicated region
      $region41: #{lit_dirnet_forward.15} parent=39 // pred_check
        %p258 = pneg %p122
      $region42: #{lit_dirnet_forward.15} parent=39 // pred_check_branch
        %260 = sbr.rel (%p258) target = $region44
      $region43: #{lit_dirnet_forward.15} parent=39 // pred_region
        %p261 = scmp.lt.s32.totalorder %s20, 1
        %s262 = scalar_select %p261, %s20, 1
        %p263 = scmp.lt.s32.totalorder %s21, 0
        %s264 = scalar_select %p263, %s21, 0
        %s265 = sadd.s32 %s264, %s262
        %s266 = smul.addr %s265, 2
        %s267 = scalar_lea.vmem %s3, %s266
      $region44: #{lit_dirnet_forward.15} parent=39 // pred_fallthru
        _
    $region40: #{lit_dirnet_forward.15} parent=5 // pred_fallthru
      _
  $region6: #{lit_dirnet_forward.15} parent=0 // loop_footer
    %s13 = sadd.s32 1, %s9
  $region7: #{lit_dirnet_forward.15} parent=0 // loop_footer_branch
    %8 = sbr.rel target = $region3
  $region8: #{lit_dirnet_forward.15} parent=0 // loop_exit
    _

// kernel: lit_dirnet_forward.16
$region0: #{lit_dirnet_forward.16}
  #allocation0 [shape = 'u32[]', space=smem, size = 0x4, offset = 0x4, fixed_abs, tag = 'smem constant byte address 0x4 - core index']
  #allocation1 [shape = 'u32[72,128]{1,0:T(1,128)}', space=vmem, size = 0x9000, scoped, tag = 'internal scratch']
  %s0 = inlined_call_operand.vmem [shape: f32[4,8,8], index: 0, kind: input, shape index: {}]
  %s1 = inlined_call_operand.vmem [shape: f32[16,8], index: 1, kind: input, shape index: {}]
  %s2 = inlined_call_operand.vmem [shape: f32[8,16], index: 2, kind: input, shape index: {}]
  %s3 = inlined_call_operand.vmem [shape: f32[4,16,16], index: 3, kind: output, shape index: {}]
  %s4 = sld [smem:[#allocation0]]
  $region22: #{lit_dirnet_forward.16} parent=0
    _
  %s6 = ssub.s32 1, %s4
  %s7 = scalar_select 0, %s6, %s4
  // Predicated region
  $region2: #{lit_dirnet_forward.16} parent=0 // pred_check
    _
  $region3: #{lit_dirnet_forward.16} parent=0 // pred_check_branch
    %9 = sbr.rel (0) target = $region5
  $region4: #{lit_dirnet_forward.16} parent=0 // pred_region
    _
  $region5: #{lit_dirnet_forward.16} parent=0 // pred_fallthru
    _
  // Predicated region
  $region6: #{lit_dirnet_forward.16} parent=0 // pred_check
    _
  $region7: #{lit_dirnet_forward.16} parent=0 // pred_check_branch
    %11 = sbr.rel (0) target = $region9
  $region8: #{lit_dirnet_forward.16} parent=0 // pred_region
    _
  $region9: #{lit_dirnet_forward.16} parent=0 // pred_fallthru
    _
  // Predicated region
  $region10: #{lit_dirnet_forward.16} parent=0 // pred_check
    _
  $region11: #{lit_dirnet_forward.16} parent=0 // pred_check_branch
    %13 = sbr.rel (0) target = $region13
  $region12: #{lit_dirnet_forward.16} parent=0 // pred_region
    _
  $region13: #{lit_dirnet_forward.16} parent=0 // pred_fallthru
    _
  %v14 = vld [vmem:[%s1] sm:$0xff]
  %v15 = vld [vmem:[%s1 + $0x8] sm:$0xff]
  %v16 = vld [vmem:[%s2] sm:$0xff]
  %v17 = vlaneseq
  %v18 = vshrl.u32 %v17, 7
  %v19 = vadd.s32 %v18, 8
  %v20 = vcvt.s32.f32 %v18
  %v21 = vcvt.s32.f32 %v19
  %v22 = vlaneseq
  %v23 = vand.u32 %v22, 127
  %v24 = vcvt.s32.f32 %v23
  %v25 = vld [vmem:[%s0] sm:$0xff]
  %vm26 = vcmask 64512
  %v28 = vsel %vm26, %v14, 0
  %v31 = vsel %vm26, %v15, 0
  %33 = vmatpush.msra.mxu0 0.0
  %34 = vmatpush.msra.mxu0 0.0
  %35 = vmatpush.msra.mxu0 0.0
  %36 = vmatpush.msra.mxu0 0.0
  %37 = vmatpush.msra.mxu0 0.0
  %38 = vmatpush.msra.mxu0 0.0
  %39 = vmatpush.msra.mxu0 0.0
  %40 = vmatpush.msra.mxu0 0.0
  %41 = vmatpush.msra.mxu0 0.0
  %42 = vmatpush.msra.mxu0 0.0
  %43 = vmatpush.msra.mxu0 0.0
  %44 = vmatpush.msra.mxu0 0.0
  %45 = vmatpush.msra.mxu0 0.0
  %46 = vmatpush.msra.mxu0 0.0
  %47 = vmatpush.msra.mxu0 0.0
  %48 = vmatpush.msra.mxu0 %v25
  %49 = vmatmul.f32.gmra.mxu0 %v28
  %v50 = vpop.f32.mrf.mxu0
  %v51 = vadd.f32 0.0, %v50
  %52 = vmatmul.f32.gmra.mxu0 %v31
  %v53 = vpop.f32.mrf.mxu0
  %v54 = vadd.f32 0.0, %v53
  %55 = vdwg.mxu0
  %v57 = vsel %vm26, %v51, 0
  %v60 = vsel %vm26, %v54, 0
  %62 = vmatpush.msra.mxu0 0.0
  %63 = vmatpush.msra.mxu0 0.0
  %64 = vmatpush.msra.mxu0 0.0
  %65 = vmatpush.msra.mxu0 0.0
  %66 = vmatpush.msra.mxu0 0.0
  %67 = vmatpush.msra.mxu0 0.0
  %68 = vmatpush.msra.mxu0 0.0
  %69 = vmatpush.msra.mxu0 0.0
  %70 = vmatpush.msra.mxu0 0.0
  %71 = vmatpush.msra.mxu0 0.0
  %72 = vmatpush.msra.mxu0 0.0
  %73 = vmatpush.msra.mxu0 0.0
  %74 = vmatpush.msra.mxu0 0.0
  %75 = vmatpush.msra.mxu0 0.0
  %76 = vmatpush.msra.mxu0 0.0
  %77 = vmatpush.msra.mxu0 %v16
  %78 = vmatmul.f32.gmra.mxu0 %v57
  %v79 = vpop.f32.mrf.mxu0
  %v80 = vadd.f32 %v20, %v79
  %81 = vmatmul.f32.gmra.mxu0 %v60
  %v82 = vpop.f32.mrf.mxu0
  %v83 = vadd.f32 %v21, %v82
  %84 = vdwg.mxu0
  %vm85 = vcmask 130048
  %86 = vst.msk [vmem:[%s3] sm:$0xff] %vm85, %v80
  %87 = vst.msk [vmem:[%s3 + $0x8] sm:$0xff] %vm85, %v83
  %s88 = scalar_lea.vmem %s0, 8
  %v89 = vld [vmem:[%s88] sm:$0xff]
  %90 = vmatpush.msra.mxu0 0.0
  %91 = vmatpush.msra.mxu0 0.0
  %92 = vmatpush.msra.mxu0 0.0
  %93 = vmatpush.msra.mxu0 0.0
  %94 = vmatpush.msra.mxu0 0.0
  %95 = vmatpush.msra.mxu0 0.0
  %96 = vmatpush.msra.mxu0 0.0
  %97 = vmatpush.msra.mxu0 0.0
  %98 = vmatpush.msra.mxu0 0.0
  %99 = vmatpush.msra.mxu0 0.0
  %100 = vmatpush.msra.mxu0 0.0
  %101 = vmatpush.msra.mxu0 0.0
  %102 = vmatpush.msra.mxu0 0.0
  %103 = vmatpush.msra.mxu0 0.0
  %104 = vmatpush.msra.mxu0 0.0
  %105 = vmatpush.msra.mxu0 %v89
  %106 = vmatmul.f32.gmra.mxu0 %v28
  %v107 = vpop.f32.mrf.mxu0
  %v108 = vadd.f32 0.0, %v107
  %109 = vmatmul.f32.gmra.mxu0 %v31
  %v110 = vpop.f32.mrf.mxu0
  %v111 = vadd.f32 0.0, %v110
  %112 = vdwg.mxu0
  %v114 = vsel %vm26, %v108, 0
  %v117 = vsel %vm26, %v111, 0
  %119 = vmatpush.msra.mxu0 0.0
  %120 = vmatpush.msra.mxu0 0.0
  %121 = vmatpush.msra.mxu0 0.0
  %122 = vmatpush.msra.mxu0 0.0
  %123 = vmatpush.msra.mxu0 0.0
  %124 = vmatpush.msra.mxu0 0.0
  %125 = vmatpush.msra.mxu0 0.0
  %126 = vmatpush.msra.mxu0 0.0
  %127 = vmatpush.msra.mxu0 0.0
  %128 = vmatpush.msra.mxu0 0.0
  %129 = vmatpush.msra.mxu0 0.0
  %130 = vmatpush.msra.mxu0 0.0
  %131 = vmatpush.msra.mxu0 0.0
  %132 = vmatpush.msra.mxu0 0.0
  %133 = vmatpush.msra.mxu0 0.0
  %134 = vmatpush.msra.mxu0 %v16
  %135 = vmatmul.f32.gmra.mxu0 %v114
  %v136 = vpop.f32.mrf.mxu0
  %v137 = vadd.f32 %v24, %v136
  %138 = vmatmul.f32.gmra.mxu0 %v117
  %v139 = vpop.f32.mrf.mxu0
  %v140 = vadd.f32 %v24, %v139
  %141 = vdwg.mxu0
  %s142 = scalar_lea.vmem %s3, 16
  %143 = vst.msk [vmem:[%s142] sm:$0xff] %vm85, %v137
  %144 = vst.msk [vmem:[%s142 + $0x8] sm:$0xff] %vm85, %v140
  %s145 = scalar_lea.vmem %s0, 16
  %v146 = vld [vmem:[%s145] sm:$0xff]
  %147 = vmatpush.msra.mxu0 0.0
  %148 = vmatpush.msra.mxu0 0.0
  %149 = vmatpush.msra.mxu0 0.0
  %150 = vmatpush.msra.mxu0 0.0
  %151 = vmatpush.msra.mxu0 0.0
  %152 = vmatpush.msra.mxu0 0.0
  %153 = vmatpush.msra.mxu0 0.0
  %154 = vmatpush.msra.mxu0 0.0
  %155 = vmatpush.msra.mxu0 0.0
  %156 = vmatpush.msra.mxu0 0.0
  %157 = vmatpush.msra.mxu0 0.0
  %158 = vmatpush.msra.mxu0 0.0
  %159 = vmatpush.msra.mxu0 0.0
  %160 = vmatpush.msra.mxu0 0.0
  %161 = vmatpush.msra.mxu0 0.0
  %162 = vmatpush.msra.mxu0 %v146
  %163 = vmatmul.f32.gmra.mxu0 %v28
  %v164 = vpop.f32.mrf.mxu0
  %v165 = vadd.f32 0.0, %v164
  %166 = vmatmul.f32.gmra.mxu0 %v31
  %v167 = vpop.f32.mrf.mxu0
  %v168 = vadd.f32 0.0, %v167
  %169 = vdwg.mxu0
  %v171 = vsel %vm26, %v165, 0
  %v174 = vsel %vm26, %v168, 0
  %176 = vmatpush.msra.mxu0 0.0
  %177 = vmatpush.msra.mxu0 0.0
  %178 = vmatpush.msra.mxu0 0.0
  %179 = vmatpush.msra.mxu0 0.0
  %180 = vmatpush.msra.mxu0 0.0
  %181 = vmatpush.msra.mxu0 0.0
  %182 = vmatpush.msra.mxu0 0.0
  %183 = vmatpush.msra.mxu0 0.0
  %184 = vmatpush.msra.mxu0 0.0
  %185 = vmatpush.msra.mxu0 0.0
  %186 = vmatpush.msra.mxu0 0.0
  %187 = vmatpush.msra.mxu0 0.0
  %188 = vmatpush.msra.mxu0 0.0
  %189 = vmatpush.msra.mxu0 0.0
  %190 = vmatpush.msra.mxu0 0.0
  %191 = vmatpush.msra.mxu0 %v16
  %192 = vmatmul.f32.gmra.mxu0 %v171
  %v193 = vpop.f32.mrf.mxu0
  %v194 = vadd.f32 %v20, %v193
  %195 = vmatmul.f32.gmra.mxu0 %v174
  %v196 = vpop.f32.mrf.mxu0
  %v197 = vadd.f32 %v21, %v196
  %198 = vdwg.mxu0
  %s199 = scalar_lea.vmem %s3, 32
  %200 = vst.msk [vmem:[%s199] sm:$0xff] %vm85, %v194
  %201 = vst.msk [vmem:[%s199 + $0x8] sm:$0xff] %vm85, %v197
  %s202 = scalar_lea.vmem %s0, 24
  %v203 = vld [vmem:[%s202] sm:$0xff]
  %204 = vmatpush.msra.mxu0 0.0
  %205 = vmatpush.msra.mxu0 0.0
  %206 = vmatpush.msra.mxu0 0.0
  %207 = vmatpush.msra.mxu0 0.0
  %208 = vmatpush.msra.mxu0 0.0
  %209 = vmatpush.msra.mxu0 0.0
  %210 = vmatpush.msra.mxu0 0.0
  %211 = vmatpush.msra.mxu0 0.0
  %212 = vmatpush.msra.mxu0 0.0
  %213 = vmatpush.msra.mxu0 0.0
  %214 = vmatpush.msra.mxu0 0.0
  %215 = vmatpush.msra.mxu0 0.0
  %216 = vmatpush.msra.mxu0 0.0
  %217 = vmatpush.msra.mxu0 0.0
  %218 = vmatpush.msra.mxu0 0.0
  %219 = vmatpush.msra.mxu0 %v203
  %220 = vmatmul.f32.gmra.mxu0 %v28
  %v221 = vpop.f32.mrf.mxu0
  %v222 = vadd.f32 0.0, %v221
  %223 = vmatmul.f32.gmra.mxu0 %v31
  %v224 = vpop.f32.mrf.mxu0
  %v225 = vadd.f32 0.0, %v224
  %226 = vdwg.mxu0
  %v228 = vsel %vm26, %v222, 0
  %v231 = vsel %vm26, %v225, 0
  %233 = vmatpush.msra.mxu0 0.0
  %234 = vmatpush.msra.mxu0 0.0
  %235 = vmatpush.msra.mxu0 0.0
  %236 = vmatpush.msra.mxu0 0.0
  %237 = vmatpush.msra.mxu0 0.0
  %238 = vmatpush.msra.mxu0 0.0
  %239 = vmatpush.msra.mxu0 0.0
  %240 = vmatpush.msra.mxu0 0.0
  %241 = vmatpush.msra.mxu0 0.0
  %242 = vmatpush.msra.mxu0 0.0
  %243 = vmatpush.msra.mxu0 0.0
  %244 = vmatpush.msra.mxu0 0.0
  %245 = vmatpush.msra.mxu0 0.0
  %246 = vmatpush.msra.mxu0 0.0
  %247 = vmatpush.msra.mxu0 0.0
  %248 = vmatpush.msra.mxu0 %v16
  %249 = vmatmul.f32.gmra.mxu0 %v228
  %v250 = vpop.f32.mrf.mxu0
  %v251 = vadd.f32 %v24, %v250
  %252 = vmatmul.f32.gmra.mxu0 %v231
  %v253 = vpop.f32.mrf.mxu0
  %v254 = vadd.f32 %v24, %v253
  %255 = vdwg.mxu0
  %s256 = scalar_lea.vmem %s3, 48
  %257 = vst.msk [vmem:[%s256] sm:$0xff] %vm85, %v251
  %258 = vst.msk [vmem:[%s256 + $0x8] sm:$0xff] %vm85, %v254
  // Predicated region
  $region14: #{lit_dirnet_forward.16} parent=0 // pred_check
    _
  $region15: #{lit_dirnet_forward.16} parent=0 // pred_check_branch
    %260 = sbr.rel (0) target = $region17
  $region16: #{lit_dirnet_forward.16} parent=0 // pred_region
    _
  $region17: #{lit_dirnet_forward.16} parent=0 // pred_fallthru
    _
  // Predicated region
  $region18: #{lit_dirnet_forward.16} parent=0 // pred_check
    _
  $region19: #{lit_dirnet_forward.16} parent=0 // pred_check_branch
    %262 = sbr.rel (0) target = $region21
  $region20: #{lit_dirnet_forward.16} parent=0 // pred_region
    _
  $region21: #{lit_dirnet_forward.16} parent=0 // pred_fallthru
    _

// kernel: lit_dirnet_forward.17
$region0: #{lit_dirnet_forward.17}
  #allocation0 [shape = 'u32[]', space=smem, size = 0x4, offset = 0x4, fixed_abs, tag = 'smem constant byte address 0x4 - core index']
  #allocation1 [shape = 'u32[72,128]{1,0:T(1,128)}', space=vmem, size = 0x9000, scoped, tag = 'internal scratch']
  %s0 = inlined_call_operand.vmem [shape: f32[2,2,256], index: 0, kind: input, shape index: {}]
  %s1 = inlined_call_operand.vmem [shape: f32[2,16,16], index: 1, kind: input, shape index: {}]
  %s2 = inlined_call_operand.vmem [shape: f32[2,1,256], index: 2, kind: output, shape index: {}]
  %s3 = sld [smem:[#allocation0]]
  $region41: #{lit_dirnet_forward.17} parent=0
    _
  %s5 = ssub.s32 1, %s3
  %s6 = scalar_select 0, %s5, %s3
  loop: start=0, step=1, limit=4
  $region2: #{lit_dirnet_forward.17} parent=0 // loop_pre_header
    _
  $region3: #{lit_dirnet_forward.17} parent=0 // loop_header
    %s8 = sphi 0, %s12
    %p9 = scmp.ge.s32.totalorder %s8, 4
    %s15 = sphi 0, %s27
    %s16 = sphi 0, %s23
    %s17 = sphi 0, %s15
    %s18 = sphi 0, %s16
    %s19 = sphi 0, %s17
    %s20 = sphi 0, %s18
    %s32 = sphi 0, %s34
    %s35 = sphi 0, %s32
    %s36 = sphi 0, %s35
    %s52 = sphi 0, %s36
    %s58 = sphi 0, %s60
    %s61 = sphi 0, %s58
    %s62 = sphi 0, %s61
    %s78 = sphi 0, %s62
    %s86 = sphi 0, %s88
    %s89 = sphi 0, %s86
    %s90 = sphi 0, %s89
    %s106 = sphi 0, %s90
  $region4: #{lit_dirnet_forward.17} parent=0 // loop_header_branch
    %11 = sbr.rel (%p9) target = $region8
  $region5: #{lit_dirnet_forward.17} parent=0 // loop_body
    %s13 = ssub.s32 %s8, 1
    %s14 = ssub.s32 %s8, 2
    %s21 = sadd.s32 1, %s16
    %p22 = scmp.ge.s32.totalorder %s21, 1
    %s23 = scalar_select %p22, 0, %s21
    %s24 = sadd.s32 1, %s15
    %s25 = scalar_select %p22, %s24, %s15
    %p26 = scmp.ge.s32.totalorder %s25, 2
    %s27 = scalar_select %p26, 0, %s25
    %s28 = ssub.s32 %s15, %s27
    %s29 = ssub.s32 %s16, %s23
    %s30 = sor.u32 %s28, %s29
    %p31 = scmp.eq.s32.totalorder %s30, 0
    %s33 = sadd.s32 %s32, 1
    %s34 = scalar_select %p31, %s32, %s33
    %p37 = pneg %p31
    %p38 = scmp.eq.s32.totalorder %s8, 1
    %p39 = por %p37, %p38
    %p40 = scmp.ne.s32.totalorder %s32, %s35
    %p41 = scmp.eq.s32.totalorder %s8, 0
    %p42 = por %p40, %p41
    %p43 = scmp.ne.s32.totalorder %s32, %s35
    %p44 = scmp.eq.s32.totalorder %s13, 1
    %p45 = por %p43, %p44
    %p46 = scmp.ne.s32.totalorder %s35, %s36
    %p47 = scmp.eq.s32.totalorder %s13, 0
    %p48 = por %p46, %p47
    %p49 = scmp.ne.s32.totalorder %s35, %s36
    %p50 = scmp.eq.s32.totalorder %s14, 1
    %p51 = por %p49, %p50
    %p53 = scmp.ne.s32.totalorder %s36, %s52
    %p54 = scmp.eq.s32.totalorder %s14, 0
    %p55 = por %p53, %p54
    %s56 = ssub.s32 %s15, %s27
    %p57 = scmp.eq.s32.totalorder %s56, 0
    %s59 = sadd.s32 %s58, 1
    %s60 = scalar_select %p57, %s58, %s59
    %p63 = pneg %p57
    %p64 = scmp.eq.s32.totalorder %s8, 1
    %p65 = por %p63, %p64
    %p66 = scmp.ne.s32.totalorder %s58, %s61
    %p67 = scmp.eq.s32.totalorder %s8, 0
    %p68 = por %p66, %p67
    %p69 = scmp.ne.s32.totalorder %s58, %s61
    %p70 = scmp.eq.s32.totalorder %s13, 1
    %p71 = por %p69, %p70
    %p72 = scmp.ne.s32.totalorder %s61, %s62
    %p73 = scmp.eq.s32.totalorder %s13, 0
    %p74 = por %p72, %p73
    %p75 = scmp.ne.s32.totalorder %s61, %s62
    %p76 = scmp.eq.s32.totalorder %s14, 1
    %p77 = por %p75, %p76
    %p79 = scmp.ne.s32.totalorder %s62, %s78
    %p80 = scmp.eq.s32.totalorder %s14, 0
    %p81 = por %p79, %p80
    %s82 = ssub.s32 %s15, %s27
    %s83 = ssub.s32 %s16, %s23
    %s84 = sor.u32 %s82, %s83
    %p85 = scmp.eq.s32.totalorder %s84, 0
    %s87 = sadd.s32 %s86, 1
    %s88 = scalar_select %p85, %s86, %s87
    %p91 = pneg %p85
    %p92 = scmp.eq.s32.totalorder %s8, 1
    %p93 = por %p91, %p92
    %p94 = scmp.ne.s32.totalorder %s86, %s89
    %p95 = scmp.eq.s32.totalorder %s8, 0
    %p96 = por %p94, %p95
    %p97 = scmp.ne.s32.totalorder %s86, %s89
    %p98 = scmp.eq.s32.totalorder %s13, 1
    %p99 = por %p97, %p98
    %p100 = scmp.ne.s32.totalorder %s89, %s90
    %p101 = scmp.eq.s32.totalorder %s13, 0
    %p102 = por %p100, %p101
    %p103 = scmp.ne.s32.totalorder %s89, %s90
    %p104 = scmp.eq.s32.totalorder %s14, 1
    %p105 = por %p103, %p104
    %p107 = scmp.ne.s32.totalorder %s90, %s106
    %p108 = scmp.eq.s32.totalorder %s14, 0
    %p109 = por %p107, %p108
    %p110 = scmp.le.s32.totalorder 1, %s8
    %p111 = scmp.lt.s32.totalorder %s8, 3
    %p112 = pnand %p110, %p111
    %p113 = pneg %p112
    // Predicated region
    $region9: #{lit_dirnet_forward.17} parent=5 // pred_check
      _
    $region10: #{lit_dirnet_forward.17} parent=5 // pred_check_branch
      %115 = sbr.rel (%p112) target = $region12
    $region11: #{lit_dirnet_forward.17} parent=5 // pred_region
      %s116 = ssub.s32 %s8, 1
    $region12: #{lit_dirnet_forward.17} parent=5 // pred_fallthru
      _
    %p117 = scmp.lt.s32.totalorder %s8, 2
    // Predicated region
    $region13: #{lit_dirnet_forward.17} parent=5 // pred_check
      %p118 = pneg %p117
    $region14: #{lit_dirnet_forward.17} parent=5 // pred_check_branch
      %120 = sbr.rel (%p118) target = $region16
    $region15: #{lit_dirnet_forward.17} parent=5 // pred_region
      // Predicated region
      $region17: #{lit_dirnet_forward.17} parent=15 // pred_check
        %p121 = pneg %p42
      $region18: #{lit_dirnet_forward.17} parent=15 // pred_check_branch
        %123 = sbr.rel (%p121) target = $region20
      $region19: #{lit_dirnet_forward.17} parent=15 // pred_region
        %s124 = smul.u32 2, %s16
        %p125 = scmp.lt.s32.totalorder %s15, 1
        %s126 = scalar_select %p125, %s15, 1
        %p127 = scmp.lt.s32.totalorder %s124, 1
        %s128 = scalar_select %p127, %s124, 1
        %s129 = smul.addr %s126, 2
        %s130 = sadd.s32 %s128, %s129
        %s131 = smul.addr %s130, 2
        %s132 = scalar_lea.vmem %s0, %s131
        %s133 = smul.u32 2, %s16
      $region20: #{lit_dirnet_forward.17} parent=15 // pred_fallthru
        _
      // Predicated region
      $region21: #{lit_dirnet_forward.17} parent=15 // pred_check
        %p134 = pneg %p68
      $region22: #{lit_dirnet_forward.17} parent=15 // pred_check_branch
        %136 = sbr.rel (%p134) target = $region24
      $region23: #{lit_dirnet_forward.17} parent=15 // pred_region
        %p137 = scmp.lt.s32.totalorder %s15, 1
        %s138 = scalar_select %p137, %s15, 1
        %s139 = smul.addr %s138, 2
        %s140 = smul.addr %s139, 8
        %s141 = scalar_lea.vmem %s1, %s140
      $region24: #{lit_dirnet_forward.17} parent=15 // pred_fallthru
        _
    $region16: #{lit_dirnet_forward.17} parent=5 // pred_fallthru
      _
    %p142 = scmp.le.s32.totalorder 1, %s8
    %p143 = scmp.lt.s32.totalorder %s8, 3
    %p144 = pnand %p142, %p143
    %p145 = pneg %p144
    // Predicated region
    $region25: #{lit_dirnet_forward.17} parent=5 // pred_check
      _
    $region26: #{lit_dirnet_forward.17} parent=5 // pred_check_branch
      %147 = sbr.rel (%p144) target = $region28
    $region27: #{lit_dirnet_forward.17} parent=5 // pred_region
      %s148 = ssub.s32 %s8, 1
      %s149 = smul.u32 2, %s18
      %p150 = scmp.lt.s32.totalorder %s17, 1
      %s151 = scalar_select %p150, %s17, 1
      %p152 = scmp.lt.s32.totalorder %s149, 1
      %s153 = scalar_select %p152, %s149, 1
      %s154 = smul.addr %s151, 2
      %s155 = sadd.s32 %s153, %s154
      %s156 = smul.addr %s155, 2
      %s157 = scalar_lea.vmem %s0, %s156
      %p158 = pneg %p48
      %p159 = pneg %p45
      %p160 = scmp.lt.s32.totalorder %s17, 1
      %s161 = scalar_select %p160, %s17, 1
      %s162 = smul.addr %s161, 2
      %s163 = smul.addr %s162, 8
      %s164 = scalar_lea.vmem %s1, %s163
      %p165 = pneg %p74
      %p166 = pneg %p71
      %p167 = pneg %p102
      %p168 = pneg %p99
      %s169 = smul.u32 2, %s18
      %p170 = scmp.lt.s32.totalorder %s17, 1
      %s171 = scalar_select %p170, %s17, 1
      %p172 = scmp.lt.s32.totalorder %s169, 1
      %s173 = scalar_select %p172, %s169, 1
      %s174 = smul.addr %s171, 2
      %s175 = sadd.s32 %s173, %s174
      %s176 = scalar_lea.vmem %s2, %s175
      %s177 = smul.u32 2, %s18
      %p178 = scmp.lt.s32.totalorder %s17, 1
      %s179 = scalar_select %p178, %s17, 1
      %p180 = scmp.lt.s32.totalorder %s177, 1
      %s181 = scalar_select %p180, %s177, 1
      %s182 = smul.addr %s179, 2
      %s183 = sadd.s32 %s181, %s182
      %s184 = smul.addr %s183, 2
      %s185 = scalar_lea.vmem %s0, %s184
      %s186 = smul.u32 2, %s18
      %p187 = scmp.lt.s32.totalorder %s17, 1
      %s188 = scalar_select %p187, %s17, 1
      %s189 = smul.addr %s188, 2
      %s190 = smul.addr %s189, 8
      %s191 = scalar_lea.vmem %s1, %s190
      %s192 = smul.u32 2, %s18
      %p193 = scmp.lt.s32.totalorder %s17, 1
      %s194 = scalar_select %p193, %s17, 1
      %p195 = scmp.lt.s32.totalorder %s192, 1
      %s196 = scalar_select %p195, %s192, 1
      %s197 = smul.addr %s194, 2
      %s198 = sadd.s32 %s196, %s197
      %s199 = scalar_lea.vmem %s2, %s198
      %s200 = smul.u32 2, %s18
      %v201 = vld [vmem:[%s185] ss:$2 sm:$0x3]
      %s202 = scalar_lea.vmem %s185, 1
      %v203 = vld [vmem:[%s202] ss:$2 sm:$0x3]
      %v204 = vlaneseq
      %v205 = vshrl.u32 %v204, 7
      %v206 = vadd.s32 %v205, 8
      %v207 = vcvt.s32.f32 %v205
      %v208 = vcvt.s32.f32 %v206
      %v210 = vperm.slane %v201, 0
      %v211 = vperm.slane %v201, 1
      %v214 = vsub.f32 %v207, %v210
      %v215 = vsub.f32 %v207, %v211
      %v216 = vsub.f32 %v208, %v210
      %v217 = vsub.f32 %v208, %v211
      %v218 = vand.u32 2147483647, %v214
      %v219 = vand.u32 2147483647, %v215
      %v220 = vand.u32 2147483647, %v216
      %v221 = vand.u32 2147483647, %v217
      %v222 = vsub.f32 1.0, %v218
      %v223 = vsub.f32 1.0, %v219
      %v224 = vsub.f32 1.0, %v220
      %v225 = vsub.f32 1.0, %v221
      %v226 = vmax.f32 %v222, 0.0
      %v227 = vmax.f32 %v223, 0.0
      %v228 = vmax.f32 %v224, 0.0
      %v229 = vmax.f32 %v225, 0.0
      %v231 = vperm.slane %v203, 0
      %v232 = vperm.slane %v203, 1
      %v235 = vsub.f32 %v207, %v231
      %v236 = vsub.f32 %v207, %v232
      %v237 = vsub.f32 %v208, %v231
      %v238 = vsub.f32 %v208, %v232
      %v239 = vand.u32 2147483647, %v235
      %v240 = vand.u32 2147483647, %v236
      %v241 = vand.u32 2147483647, %v237
      %v242 = vand.u32 2147483647, %v238
      %v243 = vsub.f32 1.0, %v239
      %v244 = vsub.f32 1.0, %v240
      %v245 = vsub.f32 1.0, %v241
      %v246 = vsub.f32 1.0, %v242
      %v247 = vmax.f32 %v243, 0.0
      %v248 = vmax.f32 %v244, 0.0
      %v249 = vmax.f32 %v245, 0.0
      %v250 = vmax.f32 %v246, 0.0
      %v251 = vld [vmem:[%s191] sm:$0xff]
      %v252 = vld [vmem:[%s191 + $0x8] sm:$0xff]
      %vm253 = vcmask 130048
      %v255 = vsel %vm253, %v251, 0
      %v258 = vsel %vm253, %v252, 0
      %260 = vmatpush.msra.mxu0 0.0
      %261 = vmatpush.msra.mxu0 0.0
      %262 = vmatpush.msra.mxu0 0.0
      %263 = vmatpush.msra.mxu0 0.0
      %264 = vmatpush.msra.mxu0 0.0
      %265 = vmatpush.msra.mxu0 0.0
      %266 = vmatpush.msra.mxu0 0.0
      %267 = vmatpush.msra.mxu0 0.0
      %268 = vmatpush.msra.mxu0 0.0
      %269 = vmatpush.msra.mxu0 0.0
      %270 = vmatpush.msra.mxu0 0.0
      %271 = vmatpush.msra.mxu0 0.0
      %272 = vmatpush.msra.mxu0 0.0
      %273 = vmatpush.msra.mxu0 0.0
      %274 = vmatpush.msra.mxu0 %v228
      %275 = vmatpush.msra.mxu0 %v226
      %276 = vmatmul.f32.gmra.mxu0 %v255
      %v277 = vpop.f32.mrf.mxu0
      %v278 = vadd.f32 0.0, %v277
      %279 = vmatmul.f32.gmra.mxu0 %v258
      %v280 = vpop.f32.mrf.mxu0
      %v281 = vadd.f32 0.0, %v280
      %282 = vdwg.mxu0
      %283 = vmatpush.msra.mxu0 0.0
      %284 = vmatpush.msra.mxu0 0.0
      %285 = vmatpush.msra.mxu0 0.0
      %286 = vmatpush.msra.mxu0 0.0
      %287 = vmatpush.msra.mxu0 0.0
      %288 = vmatpush.msra.mxu0 0.0
      %289 = vmatpush.msra.mxu0 0.0
      %290 = vmatpush.msra.mxu0 0.0
      %291 = vmatpush.msra.mxu0 0.0
      %292 = vmatpush.msra.mxu0 0.0
      %293 = vmatpush.msra.mxu0 0.0
      %294 = vmatpush.msra.mxu0 0.0
      %295 = vmatpush.msra.mxu0 0.0
      %296 = vmatpush.msra.mxu0 0.0
      %297 = vmatpush.msra.mxu0 %v229
      %298 = vmatpush.msra.mxu0 %v227
      %299 = vmatmul.f32.gmra.mxu0 %v255
      %v300 = vpop.f32.mrf.mxu0
      %v301 = vadd.f32 0.0, %v300
      %302 = vmatmul.f32.gmra.mxu0 %v258
      %v303 = vpop.f32.mrf.mxu0
      %v304 = vadd.f32 0.0, %v303
      %305 = vdwg.mxu0
      %v306 = vmul.f32 %v247, %v278
      %v307 = vmul.f32 %v248, %v301
      %v308 = vmul.f32 %v249, %v281
      %v309 = vmul.f32 %v250, %v304
      %v310 = vadd.f32 %v306, %v308
      %v311 = vrot.slane %v310, 4
      %v312 = vadd.f32 %v310, %v311
      %v313 = vrot.slane %v312, 2
      %v314 = vadd.f32 %v312, %v313
      %v315 = vrot.slane %v314, 1
      %v316 = vadd.f32 %v314, %v315
      %v317 = vadd.f32 %v307, %v309
      %v318 = vrot.slane %v317, 4
      %v319 = vadd.f32 %v317, %v318
      %v320 = vrot.slane %v319, 2
      %v321 = vadd.f32 %v319, %v320
      %v322 = vrot.slane %v321, 1
      %v323 = vadd.f32 %v321, %v322
      %v326 = vrot.slane %v323, 7
      %vm327 = vcmask 1040384
      %v328 = vsel %vm327, %v316, %v326
      %v330 = vlaneseq
      %vm331 = vcmp.ge.s32.totalorder %v330, 0
      %vm332 = vcmp.lt.s32.totalorder %v330, 256
      %vm333 = vmand %vm331, %vm332
      %334 = vst.msk [vmem:[%s199] sm:$0x3] %vm333, %v328
      %s335 = smul.u32 2, %s18
      %p336 = scmp.lt.s32.totalorder %s17, 1
      %s337 = scalar_select %p336, %s17, 1
      %p338 = scmp.lt.s32.totalorder %s335, 1
      %s339 = scalar_select %p338, %s335, 1
      %s340 = smul.addr %s337, 2
      %s341 = sadd.s32 %s339, %s340
      %s342 = scalar_lea.vmem %s2, %s341
      // Predicated region
      $region29: #{lit_dirnet_forward.17} parent=27 // pred_check
        %p343 = pneg %p99
      $region30: #{lit_dirnet_forward.17} parent=27 // pred_check_branch
        %345 = sbr.rel (%p343) target = $region32
      $region31: #{lit_dirnet_forward.17} parent=27 // pred_region
        %s346 = smul.u32 2, %s18
      $region32: #{lit_dirnet_forward.17} parent=27 // pred_fallthru
        _
    $region28: #{lit_dirnet_forward.17} parent=5 // pred_fallthru
      _
    %p347 = scmp.le.s32.totalorder 2, %s8
    // Predicated region
    $region33: #{lit_dirnet_forward.17} parent=5 // pred_check
      %p348 = pneg %p347
    $region34: #{lit_dirnet_forward.17} parent=5 // pred_check_branch
      %350 = sbr.rel (%p348) target = $region36
    $region35: #{lit_dirnet_forward.17} parent=5 // pred_region
      %s351 = ssub.s32 %s8, 2
      // Predicated region
      $region37: #{lit_dirnet_forward.17} parent=35 // pred_check
        %p352 = pneg %p105
      $region38: #{lit_dirnet_forward.17} parent=35 // pred_check_branch
        %354 = sbr.rel (%p352) target = $region40
      $region39: #{lit_dirnet_forward.17} parent=35 // pred_region
        %s355 = smul.u32 2, %s20
        %p356 = scmp.lt.s32.totalorder %s19, 1
        %s357 = scalar_select %p356, %s19, 1
        %p358 = scmp.lt.s32.totalorder %s355, 1
        %s359 = scalar_select %p358, %s355, 1
        %s360 = smul.addr %s357, 2
        %s361 = sadd.s32 %s359, %s360
        %s362 = scalar_lea.vmem %s2, %s361
      $region40: #{lit_dirnet_forward.17} parent=35 // pred_fallthru
        _
    $region36: #{lit_dirnet_forward.17} parent=5 // pred_fallthru
      _
  $region6: #{lit_dirnet_forward.17} parent=0 // loop_footer
    %s12 = sadd.s32 1, %s8
  $region7: #{lit_dirnet_forward.17} parent=0 // loop_footer_branch
    %7 = sbr.rel target = $region3
  $region8: #{lit_dirnet_forward.17} parent=0 // loop_exit
    _

</llo_original>
